<compile_context>
chip_gen: v5e
topology: v5e:2x2
jax: 0.10.0
libtpu: 0.0.40
codegen_flags: <defaults>
</compile_context>

<pallas_src>
import functools

import jax
import jax.numpy as jnp
from jax.experimental import pallas as pl
from jax.experimental.pallas import tpu as pltpu


def _encoder_gru_kernel(lens_ref, x_ref, wih_ref, whh_ref, bias1_ref, bhn_ref,
                        out_ref, hfinal_ref, gi_scr, *, seq_len, batch, hidden):
    """Single-invocation GRU encoder forward (padded, lane/sublane aligned).

    lens_ref   : (B, 1)       int32  valid length per (padded) batch element
    x_ref      : (T*B, H)     f32    embedded inputs, time-major, flattened
    wih_ref    : (H, 3H)      f32    gate-concatenated W_ih^T  (gates r|z|n)
    whh_ref    : (H, 3H)      f32    gate-concatenated W_hh^T
    bias1_ref  : (1, 3H)      f32    [b_ir+b_hr | b_iz+b_hz | b_in]
    bhn_ref    : (1, H)       f32    b_hn (stays inside r*(...))
    out_ref    : (T, B, H)    f32    outputs (zeros at padded positions)
    hfinal_ref : (B, H)       f32    final hidden state
    gi_scr     : (T*B, 3H)    f32    VMEM scratch: hoisted input projection
    """
    T, B, H = seq_len, batch, hidden

    # ---- Phase 1 (off the serial path): ONE fused input-projection matmul ----
    gi_scr[...] = (
        jnp.dot(x_ref[...], wih_ref[...], preferred_element_type=jnp.float32)
        + bias1_ref[...])

    # Hoisted (1,H) -> (B,H) broadcast of b_hn (JAX does not CSE broadcasts).
    b_hn = jnp.broadcast_to(bhn_ref[...], (B, H))
    lens = lens_ref[...]                                    # (B, 1) int32

    h = jnp.zeros((B, H), jnp.float32)                      # hidden=None -> zeros
    # TODO(synk): for production T, switch to lax.fori_loop(..., unroll=4..8)
    # with pl.ds/pl.multiple_of indexing instead of a full static unroll.
    for t in range(T):                                      # static unroll (T=8)
        row = t * B                                         # B padded to 8 -> aligned
        gi_t = gi_scr[row:row + B, :]                       # (B, 3H) aligned load

        # ONE hidden matmul per step on the critical path (gates fused on lanes).
        gh = jnp.dot(h, whh_ref[...], preferred_element_type=jnp.float32)

        r = jax.nn.sigmoid(gi_t[:, 0:H] + gh[:, 0:H])
        z = jax.nn.sigmoid(gi_t[:, H:2 * H] + gh[:, H:2 * H])
        n = jnp.tanh(gi_t[:, 2 * H:] + r * (gh[:, 2 * H:] + b_hn))
        h_new = (1.0 - z) * n + z * h

        # pack_padded_sequence semantics: padded steps freeze h, zero the output.
        valid = lens > t                                    # (B,1), bcast over H
        h = jnp.where(valid, h_new, h)
        out_ref[t] = jnp.where(valid, h_new, 0.0)           # per-step unmasked store

    hfinal_ref[...] = h                                     # written unconditionally


def _round_up(x, m):
    return ((x + m - 1) // m) * m


def encoder_rnn_forward(input_seq, input_lengths, embedding, gru_params):
    """EncoderRNN.forward (n_layers=1, unidirectional).

    input_seq:     (T, B) int32
    input_lengths: (B,)   int32 (sorted descending, as pack_padded_sequence needs)
    embedding:     (V, H) float32
    gru_params:    dict with w_ih (3H,H), w_hh (3H,H), b_ih (3H,), b_hh (3H,)
                   in PyTorch gate order (r, z, n).

    Returns outputs (T, B, H), hidden (1, B, H).
    """
    T, B = input_seq.shape
    H = embedding.shape[1]
    Bp = _round_up(B, 8)       # sublane-aligned batch (padded rows have len 0)
    Hp = _round_up(H, 128)     # lane-aligned hidden -> unmasked (8,128) tiles

    # Glue: embedding gather stays in plain JAX.
    # TODO(synk): at production scale fuse the gather into the kernel via
    # PrefetchScalarGridSpec token ids + DMA row gather to avoid the HBM
    # write-then-read of the embedded tensor.
    embedded = jnp.take(embedding, input_seq, axis=0).astype(jnp.float32)  # (T,B,H)
    x = jnp.zeros((T, Bp, Hp), jnp.float32).at[:, :B, :H].set(embedded)
    x_flat = x.reshape(T * Bp, Hp)

    def pad_gate(w):   # (H_out, H_in) gate weight -> (Hp, Hp) transposed, 0-padded
        return jnp.zeros((Hp, Hp), jnp.float32).at[:H, :H].set(w.T)

    def pad_vec(v):
        return jnp.zeros((Hp,), jnp.float32).at[:H].set(v)

    w_ih = gru_params["w_ih"].reshape(3, H, H)     # gate order (r, z, n)
    w_hh = gru_params["w_hh"].reshape(3, H, H)
    b_ih = gru_params["b_ih"].reshape(3, H)
    b_hh = gru_params["b_hh"].reshape(3, H)

    # Gates concatenated along the lane axis -> ONE matmul per use.
    wih_cat = jnp.concatenate([pad_gate(w_ih[g]) for g in range(3)], axis=1)  # (Hp,3Hp)
    whh_cat = jnp.concatenate([pad_gate(w_hh[g]) for g in range(3)], axis=1)  # (Hp,3Hp)

    # Fold b_hh into Phase 1 for r and z only; b_hn must stay inside r*(...).
    bias1 = jnp.concatenate([pad_vec(b_ih[0] + b_hh[0]),
                             pad_vec(b_ih[1] + b_hh[1]),
                             pad_vec(b_ih[2])]).reshape(1, 3 * Hp)
    bhn = pad_vec(b_hh[2]).reshape(1, Hp)

    lens = jnp.zeros((Bp, 1), jnp.int32).at[:B, 0].set(
        input_lengths.astype(jnp.int32))           # padded rows: len 0 -> inert

    kernel = functools.partial(_encoder_gru_kernel, seq_len=T, batch=Bp, hidden=Hp)
    vmem = pl.BlockSpec(memory_space=pltpu.MemorySpace.VMEM)

    # TODO(synk): production shapes — chunk time (emit_pipeline / grid axis) so
    # the gi scratch and x slab fit v7x's 64 MiB VMEM, split the batch across
    # v7x's 2 TensorCores, and keep weights in bf16 with f32 accumulation.
    outputs_p, hfinal_p = pl.pallas_call(
        kernel,
        out_shape=(
            jax.ShapeDtypeStruct((T, Bp, Hp), jnp.float32),
            jax.ShapeDtypeStruct((Bp, Hp), jnp.float32),
        ),
        in_specs=[vmem] * 6,
        out_specs=(vmem, vmem),
        scratch_shapes=[pltpu.VMEM((T * Bp, 3 * Hp), jnp.float32)],
    )(lens, x_flat, wih_cat, whh_cat, bias1, bhn)

    outputs = outputs_p[:, :B, :H]
    hidden = hfinal_p[:B, :H].reshape(1, B, H)
    return outputs, hidden


def _reference_forward(input_seq, input_lengths, embedding, gru_params):
    """Pure-JAX reference of the same semantics (correctness check)."""
    T, B = input_seq.shape
    H = embedding.shape[1]
    embedded = jnp.take(embedding, input_seq, axis=0)
    wih_t, whh_t = gru_params["w_ih"].T, gru_params["w_hh"].T
    bih, bhh = gru_params["b_ih"], gru_params["b_hh"]

    def step(h, xt_t):
        xt, t = xt_t
        gi = xt @ wih_t + bih
        gh = h @ whh_t + bhh
        r = jax.nn.sigmoid(gi[:, :H] + gh[:, :H])
        z = jax.nn.sigmoid(gi[:, H:2 * H] + gh[:, H:2 * H])
        n = jnp.tanh(gi[:, 2 * H:] + r * gh[:, 2 * H:])
        h_new = (1.0 - z) * n + z * h
        valid = (input_lengths > t)[:, None]
        h_next = jnp.where(valid, h_new, h)
        out = jnp.where(valid, h_new, 0.0)
        return h_next, out

    h0 = jnp.zeros((B, H), jnp.float32)
    hT, outs = jax.lax.scan(step, h0, (embedded, jnp.arange(T)))
    return outs, hT.reshape(1, B, H)


if __name__ == "__main__":
    key = jax.random.PRNGKey(0)
    k1, k2, k3, k4, k5, k6 = jax.random.split(key, 6)

    V = 20      # vocab size
    H = 32      # hidden_size
    T = 8       # max sequence length
    B = 4       # batch size

    bound = 1.0 / jnp.sqrt(jnp.float32(H))
    embedding = jax.random.normal(k1, (V, H), dtype=jnp.float32)
    gru_params = {
        "w_ih": jax.random.uniform(k2, (3 * H, H), jnp.float32, -bound, bound),
        "w_hh": jax.random.uniform(k3, (3 * H, H), jnp.float32, -bound, bound),
        "b_ih": jax.random.uniform(k4, (3 * H,), jnp.float32, -bound, bound),
        "b_hh": jax.random.uniform(k5, (3 * H,), jnp.float32, -bound, bound),
    }

    input_seq = jax.random.randint(k6, (T, B), 0, V, dtype=jnp.int32)
    # pack_padded_sequence requires lengths sorted descending.
    input_lengths = jnp.array([8, 6, 5, 3], dtype=jnp.int32)

    outputs, hidden = encoder_rnn_forward(input_seq, input_lengths,
                                          embedding, gru_params)
    jax.block_until_ready((outputs, hidden))

    ref_out, ref_hid = _reference_forward(input_seq, input_lengths,
                                          embedding, gru_params)
    assert outputs.shape == (T, B, H) and hidden.shape == (1, B, H)
    assert jnp.allclose(outputs, ref_out, atol=5e-5, rtol=1e-4)
    assert jnp.allclose(hidden, ref_hid, atol=5e-5, rtol=1e-4)

    print("KERNEL_OK")
</pallas_src>

<mosaic_0001>
module attributes {stable_mosaic.version = 11 : i64} {
  func.func @_encoder_gru_kernel(%arg0: memref<8x1xi32, #tpu.memory_space<vmem>>, %arg1: memref<64x128xf32, #tpu.memory_space<vmem>>, %arg2: memref<128x384xf32, #tpu.memory_space<vmem>>, %arg3: memref<128x384xf32, #tpu.memory_space<vmem>>, %arg4: memref<1x384xf32, #tpu.memory_space<vmem>>, %arg5: memref<1x128xf32, #tpu.memory_space<vmem>>, %arg6: memref<8x8x128xf32, #tpu.memory_space<vmem>>, %arg7: memref<8x128xf32, #tpu.memory_space<vmem>>, %arg8: memref<64x384xf32, #tpu.memory_space<vmem>>) attributes {dimension_semantics = [], scalar_prefetch = 0 : i64, scratch_operands = 1 : i64, tpu.core_type = #tpu.core_type<tc>} {
    %c0 = arith.constant 0 : index
    %c0_0 = arith.constant 0 : index
    %0 = vector.load %arg1[%c0, %c0_0] : memref<64x128xf32, #tpu.memory_space<vmem>>, vector<64x128xf32>
    %c0_1 = arith.constant 0 : index
    %c0_2 = arith.constant 0 : index
    %1 = vector.load %arg2[%c0_1, %c0_2] : memref<128x384xf32, #tpu.memory_space<vmem>>, vector<128x384xf32>
    %cst = arith.constant dense<0.000000e+00> : vector<64x384xf32>
    %2 = tpu.matmul %0, %1, %cst {dimension_numbers = #tpu.dot_dimension_numbers<[1], [0], [0], [1], [0, 0, 1, 1], [], []>} : vector<64x128xf32>, vector<128x384xf32>, vector<64x384xf32> -> vector<64x384xf32>
    %c0_3 = arith.constant 0 : index
    %c0_4 = arith.constant 0 : index
    %3 = vector.load %arg4[%c0_3, %c0_4] : memref<1x384xf32, #tpu.memory_space<vmem>>, vector<1x384xf32>
    %4 = vector.broadcast %3 : vector<1x384xf32> to vector<64x384xf32>
    %5 = arith.addf %2, %4 : vector<64x384xf32>
    %c0_5 = arith.constant 0 : index
    %c0_6 = arith.constant 0 : index
    %6 = vector.load %arg8[%c0_5, %c0_6] : memref<64x384xf32, #tpu.memory_space<vmem>>, vector<64x384xf32>
    tpu.vector_store %arg8[%c0_5, %c0_6], %5 {strides = array<i32>} : memref<64x384xf32, #tpu.memory_space<vmem>>, vector<64x384xf32>,
    %c0_7 = arith.constant 0 : index
    %c0_8 = arith.constant 0 : index
    %7 = vector.load %arg5[%c0_7, %c0_8] : memref<1x128xf32, #tpu.memory_space<vmem>>, vector<1x128xf32>
    %8 = vector.shape_cast %7 : vector<1x128xf32> to vector<1x128xf32>
    %9 = vector.broadcast %8 : vector<1x128xf32> to vector<8x128xf32>
    %c0_9 = arith.constant 0 : index
    %c0_10 = arith.constant 0 : index
    %10 = vector.load %arg0[%c0_9, %c0_10] : memref<8x1xi32, #tpu.memory_space<vmem>>, vector<8x1xi32>
    %cst_11 = arith.constant 0.000000e+00 : f32
    %11 = vector.broadcast %cst_11 : f32 to vector<8x128xf32>
    %c0_12 = arith.constant 0 : index
    %c0_13 = arith.constant 0 : index
    %12 = vector.load %arg8[%c0_12, %c0_13] : memref<64x384xf32, #tpu.memory_space<vmem>>, vector<8x384xf32>
    %c0_14 = arith.constant 0 : index
    %c0_15 = arith.constant 0 : index
    %13 = vector.load %arg3[%c0_14, %c0_15] : memref<128x384xf32, #tpu.memory_space<vmem>>, vector<128x384xf32>
    %cst_16 = arith.constant dense<0.000000e+00> : vector<8x384xf32>
    %14 = tpu.matmul %11, %13, %cst_16 {dimension_numbers = #tpu.dot_dimension_numbers<[1], [0], [0], [1], [0, 0, 1, 1], [], []>} : vector<8x128xf32>, vector<128x384xf32>, vector<8x384xf32> -> vector<8x384xf32>
    %15 = vector.extract_strided_slice %12 {offsets = [0, 0], sizes = [8, 128], strides = [1, 1]} : vector<8x384xf32> to vector<8x128xf32>
    %16 = vector.extract_strided_slice %14 {offsets = [0, 0], sizes = [8, 128], strides = [1, 1]} : vector<8x384xf32> to vector<8x128xf32>
    %17 = arith.addf %15, %16 : vector<8x128xf32>
    %18 = arith.negf %17 : vector<8x128xf32>
    %19 = math.exp %18 : vector<8x128xf32>
    %cst_17 = arith.constant 1.000000e+00 : f32
    %20 = vector.broadcast %cst_17 : f32 to vector<8x128xf32>
    %21 = arith.addf %20, %19 : vector<8x128xf32>
    %22 = arith.divf %20, %21 : vector<8x128xf32>
    %23 = vector.extract_strided_slice %12 {offsets = [0, 128], sizes = [8, 128], strides = [1, 1]} : vector<8x384xf32> to vector<8x128xf32>
    %24 = vector.extract_strided_slice %14 {offsets = [0, 128], sizes = [8, 128], strides = [1, 1]} : vector<8x384xf32> to vector<8x128xf32>
    %25 = arith.addf %23, %24 : vector<8x128xf32>
    %26 = arith.negf %25 : vector<8x128xf32>
    %27 = math.exp %26 : vector<8x128xf32>
    %cst_18 = arith.constant 1.000000e+00 : f32
    %28 = vector.broadcast %cst_18 : f32 to vector<8x128xf32>
    %29 = arith.addf %28, %27 : vector<8x128xf32>
    %30 = arith.divf %28, %29 : vector<8x128xf32>
    %31 = vector.extract_strided_slice %12 {offsets = [0, 256], sizes = [8, 128], strides = [1, 1]} : vector<8x384xf32> to vector<8x128xf32>
    %32 = vector.extract_strided_slice %14 {offsets = [0, 256], sizes = [8, 128], strides = [1, 1]} : vector<8x384xf32> to vector<8x128xf32>
    %33 = arith.addf %32, %9 : vector<8x128xf32>
    %34 = arith.mulf %22, %33 : vector<8x128xf32>
    %35 = arith.addf %31, %34 : vector<8x128xf32>
    %36 = math.tanh %35 : vector<8x128xf32>
    %cst_19 = arith.constant 1.000000e+00 : f32
    %37 = vector.broadcast %cst_19 : f32 to vector<8x128xf32>
    %38 = arith.subf %37, %30 : vector<8x128xf32>
    %39 = arith.mulf %38, %36 : vector<8x128xf32>
    %40 = arith.mulf %30, %11 : vector<8x128xf32>
    %41 = arith.addf %39, %40 : vector<8x128xf32>
    %c0_i32 = arith.constant 0 : i32
    %42 = vector.broadcast %c0_i32 : i32 to vector<8x1xi32>
    %43 = arith.cmpi sgt, %10, %42 : vector<8x1xi32>
    %44 = vector.shape_cast %43 : vector<8x1xi1> to vector<8x1xi1>
    %45 = vector.broadcast %44 : vector<8x1xi1> to vector<8x128xi1>
    %46 = arith.select %45, %41, %11 : vector<8x128xi1>, vector<8x128xf32>
    %cst_20 = arith.constant 0.000000e+00 : f32
    %47 = vector.shape_cast %43 : vector<8x1xi1> to vector<8x1xi1>
    %48 = vector.broadcast %47 : vector<8x1xi1> to vector<8x128xi1>
    %49 = vector.broadcast %cst_20 : f32 to vector<8x128xf32>
    %50 = arith.select %48, %41, %49 : vector<8x128xi1>, vector<8x128xf32>
    %c0_21 = arith.constant 0 : index
    %c0_22 = arith.constant 0 : index
    %c0_23 = arith.constant 0 : index
    %51 = vector.load %arg6[%c0_21, %c0_22, %c0_23] : memref<8x8x128xf32, #tpu.memory_space<vmem>>, vector<1x8x128xf32>
    %52 = vector.shape_cast %51 : vector<1x8x128xf32> to vector<8x128xf32>
    %53 = vector.shape_cast %50 : vector<8x128xf32> to vector<1x8x128xf32>
    tpu.vector_store %arg6[%c0_21, %c0_22, %c0_23], %53 {strides = array<i32>} : memref<8x8x128xf32, #tpu.memory_space<vmem>>, vector<1x8x128xf32>,
    %c8 = arith.constant 8 : index
    %c0_24 = arith.constant 0 : index
    %54 = vector.load %arg8[%c8, %c0_24] : memref<64x384xf32, #tpu.memory_space<vmem>>, vector<8x384xf32>
    %c0_25 = arith.constant 0 : index
    %c0_26 = arith.constant 0 : index
    %55 = vector.load %arg3[%c0_25, %c0_26] : memref<128x384xf32, #tpu.memory_space<vmem>>, vector<128x384xf32>
    %cst_27 = arith.constant dense<0.000000e+00> : vector<8x384xf32>
    %56 = tpu.matmul %46, %55, %cst_27 {dimension_numbers = #tpu.dot_dimension_numbers<[1], [0], [0], [1], [0, 0, 1, 1], [], []>} : vector<8x128xf32>, vector<128x384xf32>, vector<8x384xf32> -> vector<8x384xf32>
    %57 = vector.extract_strided_slice %54 {offsets = [0, 0], sizes = [8, 128], strides = [1, 1]} : vector<8x384xf32> to vector<8x128xf32>
    %58 = vector.extract_strided_slice %56 {offsets = [0, 0], sizes = [8, 128], strides = [1, 1]} : vector<8x384xf32> to vector<8x128xf32>
    %59 = arith.addf %57, %58 : vector<8x128xf32>
    %60 = arith.negf %59 : vector<8x128xf32>
    %61 = math.exp %60 : vector<8x128xf32>
    %cst_28 = arith.constant 1.000000e+00 : f32
    %62 = vector.broadcast %cst_28 : f32 to vector<8x128xf32>
    %63 = arith.addf %62, %61 : vector<8x128xf32>
    %64 = arith.divf %62, %63 : vector<8x128xf32>
    %65 = vector.extract_strided_slice %54 {offsets = [0, 128], sizes = [8, 128], strides = [1, 1]} : vector<8x384xf32> to vector<8x128xf32>
    %66 = vector.extract_strided_slice %56 {offsets = [0, 128], sizes = [8, 128], strides = [1, 1]} : vector<8x384xf32> to vector<8x128xf32>
    %67 = arith.addf %65, %66 : vector<8x128xf32>
    %68 = arith.negf %67 : vector<8x128xf32>
    %69 = math.exp %68 : vector<8x128xf32>
    %cst_29 = arith.constant 1.000000e+00 : f32
    %70 = vector.broadcast %cst_29 : f32 to vector<8x128xf32>
    %71 = arith.addf %70, %69 : vector<8x128xf32>
    %72 = arith.divf %70, %71 : vector<8x128xf32>
    %73 = vector.extract_strided_slice %54 {offsets = [0, 256], sizes = [8, 128], strides = [1, 1]} : vector<8x384xf32> to vector<8x128xf32>
    %74 = vector.extract_strided_slice %56 {offsets = [0, 256], sizes = [8, 128], strides = [1, 1]} : vector<8x384xf32> to vector<8x128xf32>
    %75 = arith.addf %74, %9 : vector<8x128xf32>
    %76 = arith.mulf %64, %75 : vector<8x128xf32>
    %77 = arith.addf %73, %76 : vector<8x128xf32>
    %78 = math.tanh %77 : vector<8x128xf32>
    %cst_30 = arith.constant 1.000000e+00 : f32
    %79 = vector.broadcast %cst_30 : f32 to vector<8x128xf32>
    %80 = arith.subf %79, %72 : vector<8x128xf32>
    %81 = arith.mulf %80, %78 : vector<8x128xf32>
    %82 = arith.mulf %72, %46 : vector<8x128xf32>
    %83 = arith.addf %81, %82 : vector<8x128xf32>
    %c1_i32 = arith.constant 1 : i32
    %84 = vector.broadcast %c1_i32 : i32 to vector<8x1xi32>
    %85 = arith.cmpi sgt, %10, %84 : vector<8x1xi32>
    %86 = vector.shape_cast %85 : vector<8x1xi1> to vector<8x1xi1>
    %87 = vector.broadcast %86 : vector<8x1xi1> to vector<8x128xi1>
    %88 = arith.select %87, %83, %46 : vector<8x128xi1>, vector<8x128xf32>
    %cst_31 = arith.constant 0.000000e+00 : f32
    %89 = vector.shape_cast %85 : vector<8x1xi1> to vector<8x1xi1>
    %90 = vector.broadcast %89 : vector<8x1xi1> to vector<8x128xi1>
    %91 = vector.broadcast %cst_31 : f32 to vector<8x128xf32>
    %92 = arith.select %90, %83, %91 : vector<8x128xi1>, vector<8x128xf32>
    %c1 = arith.constant 1 : index
    %c0_32 = arith.constant 0 : index
    %c0_33 = arith.constant 0 : index
    %93 = vector.load %arg6[%c1, %c0_32, %c0_33] : memref<8x8x128xf32, #tpu.memory_space<vmem>>, vector<1x8x128xf32>
    %94 = vector.shape_cast %93 : vector<1x8x128xf32> to vector<8x128xf32>
    %95 = vector.shape_cast %92 : vector<8x128xf32> to vector<1x8x128xf32>
    tpu.vector_store %arg6[%c1, %c0_32, %c0_33], %95 {strides = array<i32>} : memref<8x8x128xf32, #tpu.memory_space<vmem>>, vector<1x8x128xf32>,
    %c16 = arith.constant 16 : index
    %c0_34 = arith.constant 0 : index
    %96 = vector.load %arg8[%c16, %c0_34] : memref<64x384xf32, #tpu.memory_space<vmem>>, vector<8x384xf32>
    %c0_35 = arith.constant 0 : index
    %c0_36 = arith.constant 0 : index
    %97 = vector.load %arg3[%c0_35, %c0_36] : memref<128x384xf32, #tpu.memory_space<vmem>>, vector<128x384xf32>
    %cst_37 = arith.constant dense<0.000000e+00> : vector<8x384xf32>
    %98 = tpu.matmul %88, %97, %cst_37 {dimension_numbers = #tpu.dot_dimension_numbers<[1], [0], [0], [1], [0, 0, 1, 1], [], []>} : vector<8x128xf32>, vector<128x384xf32>, vector<8x384xf32> -> vector<8x384xf32>
    %99 = vector.extract_strided_slice %96 {offsets = [0, 0], sizes = [8, 128], strides = [1, 1]} : vector<8x384xf32> to vector<8x128xf32>
    %100 = vector.extract_strided_slice %98 {offsets = [0, 0], sizes = [8, 128], strides = [1, 1]} : vector<8x384xf32> to vector<8x128xf32>
    %101 = arith.addf %99, %100 : vector<8x128xf32>
    %102 = arith.negf %101 : vector<8x128xf32>
    %103 = math.exp %102 : vector<8x128xf32>
    %cst_38 = arith.constant 1.000000e+00 : f32
    %104 = vector.broadcast %cst_38 : f32 to vector<8x128xf32>
    %105 = arith.addf %104, %103 : vector<8x128xf32>
    %106 = arith.divf %104, %105 : vector<8x128xf32>
    %107 = vector.extract_strided_slice %96 {offsets = [0, 128], sizes = [8, 128], strides = [1, 1]} : vector<8x384xf32> to vector<8x128xf32>
    %108 = vector.extract_strided_slice %98 {offsets = [0, 128], sizes = [8, 128], strides = [1, 1]} : vector<8x384xf32> to vector<8x128xf32>
    %109 = arith.addf %107, %108 : vector<8x128xf32>
    %110 = arith.negf %109 : vector<8x128xf32>
    %111 = math.exp %110 : vector<8x128xf32>
    %cst_39 = arith.constant 1.000000e+00 : f32
    %112 = vector.broadcast %cst_39 : f32 to vector<8x128xf32>
    %113 = arith.addf %112, %111 : vector<8x128xf32>
    %114 = arith.divf %112, %113 : vector<8x128xf32>
    %115 = vector.extract_strided_slice %96 {offsets = [0, 256], sizes = [8, 128], strides = [1, 1]} : vector<8x384xf32> to vector<8x128xf32>
    %116 = vector.extract_strided_slice %98 {offsets = [0, 256], sizes = [8, 128], strides = [1, 1]} : vector<8x384xf32> to vector<8x128xf32>
    %117 = arith.addf %116, %9 : vector<8x128xf32>
    %118 = arith.mulf %106, %117 : vector<8x128xf32>
    %119 = arith.addf %115, %118 : vector<8x128xf32>
    %120 = math.tanh %119 : vector<8x128xf32>
    %cst_40 = arith.constant 1.000000e+00 : f32
    %121 = vector.broadcast %cst_40 : f32 to vector<8x128xf32>
    %122 = arith.subf %121, %114 : vector<8x128xf32>
    %123 = arith.mulf %122, %120 : vector<8x128xf32>
    %124 = arith.mulf %114, %88 : vector<8x128xf32>
    %125 = arith.addf %123, %124 : vector<8x128xf32>
    %c2_i32 = arith.constant 2 : i32
    %126 = vector.broadcast %c2_i32 : i32 to vector<8x1xi32>
    %127 = arith.cmpi sgt, %10, %126 : vector<8x1xi32>
    %128 = vector.shape_cast %127 : vector<8x1xi1> to vector<8x1xi1>
    %129 = vector.broadcast %128 : vector<8x1xi1> to vector<8x128xi1>
    %130 = arith.select %129, %125, %88 : vector<8x128xi1>, vector<8x128xf32>
    %cst_41 = arith.constant 0.000000e+00 : f32
    %131 = vector.shape_cast %127 : vector<8x1xi1> to vector<8x1xi1>
    %132 = vector.broadcast %131 : vector<8x1xi1> to vector<8x128xi1>
    %133 = vector.broadcast %cst_41 : f32 to vector<8x128xf32>
    %134 = arith.select %132, %125, %133 : vector<8x128xi1>, vector<8x128xf32>
    %c2 = arith.constant 2 : index
    %c0_42 = arith.constant 0 : index
    %c0_43 = arith.constant 0 : index
    %135 = vector.load %arg6[%c2, %c0_42, %c0_43] : memref<8x8x128xf32, #tpu.memory_space<vmem>>, vector<1x8x128xf32>
    %136 = vector.shape_cast %135 : vector<1x8x128xf32> to vector<8x128xf32>
    %137 = vector.shape_cast %134 : vector<8x128xf32> to vector<1x8x128xf32>
    tpu.vector_store %arg6[%c2, %c0_42, %c0_43], %137 {strides = array<i32>} : memref<8x8x128xf32, #tpu.memory_space<vmem>>, vector<1x8x128xf32>,
    %c24 = arith.constant 24 : index
    %c0_44 = arith.constant 0 : index
    %138 = vector.load %arg8[%c24, %c0_44] : memref<64x384xf32, #tpu.memory_space<vmem>>, vector<8x384xf32>
    %c0_45 = arith.constant 0 : index
    %c0_46 = arith.constant 0 : index
    %139 = vector.load %arg3[%c0_45, %c0_46] : memref<128x384xf32, #tpu.memory_space<vmem>>, vector<128x384xf32>
    %cst_47 = arith.constant dense<0.000000e+00> : vector<8x384xf32>
    %140 = tpu.matmul %130, %139, %cst_47 {dimension_numbers = #tpu.dot_dimension_numbers<[1], [0], [0], [1], [0, 0, 1, 1], [], []>} : vector<8x128xf32>, vector<128x384xf32>, vector<8x384xf32> -> vector<8x384xf32>
    %141 = vector.extract_strided_slice %138 {offsets = [0, 0], sizes = [8, 128], strides = [1, 1]} : vector<8x384xf32> to vector<8x128xf32>
    %142 = vector.extract_strided_slice %140 {offsets = [0, 0], sizes = [8, 128], strides = [1, 1]} : vector<8x384xf32> to vector<8x128xf32>
    %143 = arith.addf %141, %142 : vector<8x128xf32>
    %144 = arith.negf %143 : vector<8x128xf32>
    %145 = math.exp %144 : vector<8x128xf32>
    %cst_48 = arith.constant 1.000000e+00 : f32
    %146 = vector.broadcast %cst_48 : f32 to vector<8x128xf32>
    %147 = arith.addf %146, %145 : vector<8x128xf32>
    %148 = arith.divf %146, %147 : vector<8x128xf32>
    %149 = vector.extract_strided_slice %138 {offsets = [0, 128], sizes = [8, 128], strides = [1, 1]} : vector<8x384xf32> to vector<8x128xf32>
    %150 = vector.extract_strided_slice %140 {offsets = [0, 128], sizes = [8, 128], strides = [1, 1]} : vector<8x384xf32> to vector<8x128xf32>
    %151 = arith.addf %149, %150 : vector<8x128xf32>
    %152 = arith.negf %151 : vector<8x128xf32>
    %153 = math.exp %152 : vector<8x128xf32>
    %cst_49 = arith.constant 1.000000e+00 : f32
    %154 = vector.broadcast %cst_49 : f32 to vector<8x128xf32>
    %155 = arith.addf %154, %153 : vector<8x128xf32>
    %156 = arith.divf %154, %155 : vector<8x128xf32>
    %157 = vector.extract_strided_slice %138 {offsets = [0, 256], sizes = [8, 128], strides = [1, 1]} : vector<8x384xf32> to vector<8x128xf32>
    %158 = vector.extract_strided_slice %140 {offsets = [0, 256], sizes = [8, 128], strides = [1, 1]} : vector<8x384xf32> to vector<8x128xf32>
    %159 = arith.addf %158, %9 : vector<8x128xf32>
    %160 = arith.mulf %148, %159 : vector<8x128xf32>
    %161 = arith.addf %157, %160 : vector<8x128xf32>
    %162 = math.tanh %161 : vector<8x128xf32>
    %cst_50 = arith.constant 1.000000e+00 : f32
    %163 = vector.broadcast %cst_50 : f32 to vector<8x128xf32>
    %164 = arith.subf %163, %156 : vector<8x128xf32>
    %165 = arith.mulf %164, %162 : vector<8x128xf32>
    %166 = arith.mulf %156, %130 : vector<8x128xf32>
    %167 = arith.addf %165, %166 : vector<8x128xf32>
    %c3_i32 = arith.constant 3 : i32
    %168 = vector.broadcast %c3_i32 : i32 to vector<8x1xi32>
    %169 = arith.cmpi sgt, %10, %168 : vector<8x1xi32>
    %170 = vector.shape_cast %169 : vector<8x1xi1> to vector<8x1xi1>
    %171 = vector.broadcast %170 : vector<8x1xi1> to vector<8x128xi1>
    %172 = arith.select %171, %167, %130 : vector<8x128xi1>, vector<8x128xf32>
    %cst_51 = arith.constant 0.000000e+00 : f32
    %173 = vector.shape_cast %169 : vector<8x1xi1> to vector<8x1xi1>
    %174 = vector.broadcast %173 : vector<8x1xi1> to vector<8x128xi1>
    %175 = vector.broadcast %cst_51 : f32 to vector<8x128xf32>
    %176 = arith.select %174, %167, %175 : vector<8x128xi1>, vector<8x128xf32>
    %c3 = arith.constant 3 : index
    %c0_52 = arith.constant 0 : index
    %c0_53 = arith.constant 0 : index
    %177 = vector.load %arg6[%c3, %c0_52, %c0_53] : memref<8x8x128xf32, #tpu.memory_space<vmem>>, vector<1x8x128xf32>
    %178 = vector.shape_cast %177 : vector<1x8x128xf32> to vector<8x128xf32>
    %179 = vector.shape_cast %176 : vector<8x128xf32> to vector<1x8x128xf32>
    tpu.vector_store %arg6[%c3, %c0_52, %c0_53], %179 {strides = array<i32>} : memref<8x8x128xf32, #tpu.memory_space<vmem>>, vector<1x8x128xf32>,
    %c32 = arith.constant 32 : index
    %c0_54 = arith.constant 0 : index
    %180 = vector.load %arg8[%c32, %c0_54] : memref<64x384xf32, #tpu.memory_space<vmem>>, vector<8x384xf32>
    %c0_55 = arith.constant 0 : index
    %c0_56 = arith.constant 0 : index
    %181 = vector.load %arg3[%c0_55, %c0_56] : memref<128x384xf32, #tpu.memory_space<vmem>>, vector<128x384xf32>
    %cst_57 = arith.constant dense<0.000000e+00> : vector<8x384xf32>
    %182 = tpu.matmul %172, %181, %cst_57 {dimension_numbers = #tpu.dot_dimension_numbers<[1], [0], [0], [1], [0, 0, 1, 1], [], []>} : vector<8x128xf32>, vector<128x384xf32>, vector<8x384xf32> -> vector<8x384xf32>
    %183 = vector.extract_strided_slice %180 {offsets = [0, 0], sizes = [8, 128], strides = [1, 1]} : vector<8x384xf32> to vector<8x128xf32>
    %184 = vector.extract_strided_slice %182 {offsets = [0, 0], sizes = [8, 128], strides = [1, 1]} : vector<8x384xf32> to vector<8x128xf32>
    %185 = arith.addf %183, %184 : vector<8x128xf32>
    %186 = arith.negf %185 : vector<8x128xf32>
    %187 = math.exp %186 : vector<8x128xf32>
    %cst_58 = arith.constant 1.000000e+00 : f32
    %188 = vector.broadcast %cst_58 : f32 to vector<8x128xf32>
    %189 = arith.addf %188, %187 : vector<8x128xf32>
    %190 = arith.divf %188, %189 : vector<8x128xf32>
    %191 = vector.extract_strided_slice %180 {offsets = [0, 128], sizes = [8, 128], strides = [1, 1]} : vector<8x384xf32> to vector<8x128xf32>
    %192 = vector.extract_strided_slice %182 {offsets = [0, 128], sizes = [8, 128], strides = [1, 1]} : vector<8x384xf32> to vector<8x128xf32>
    %193 = arith.addf %191, %192 : vector<8x128xf32>
    %194 = arith.negf %193 : vector<8x128xf32>
    %195 = math.exp %194 : vector<8x128xf32>
    %cst_59 = arith.constant 1.000000e+00 : f32
    %196 = vector.broadcast %cst_59 : f32 to vector<8x128xf32>
    %197 = arith.addf %196, %195 : vector<8x128xf32>
    %198 = arith.divf %196, %197 : vector<8x128xf32>
    %199 = vector.extract_strided_slice %180 {offsets = [0, 256], sizes = [8, 128], strides = [1, 1]} : vector<8x384xf32> to vector<8x128xf32>
    %200 = vector.extract_strided_slice %182 {offsets = [0, 256], sizes = [8, 128], strides = [1, 1]} : vector<8x384xf32> to vector<8x128xf32>
    %201 = arith.addf %200, %9 : vector<8x128xf32>
    %202 = arith.mulf %190, %201 : vector<8x128xf32>
    %203 = arith.addf %199, %202 : vector<8x128xf32>
    %204 = math.tanh %203 : vector<8x128xf32>
    %cst_60 = arith.constant 1.000000e+00 : f32
    %205 = vector.broadcast %cst_60 : f32 to vector<8x128xf32>
    %206 = arith.subf %205, %198 : vector<8x128xf32>
    %207 = arith.mulf %206, %204 : vector<8x128xf32>
    %208 = arith.mulf %198, %172 : vector<8x128xf32>
    %209 = arith.addf %207, %208 : vector<8x128xf32>
    %c4_i32 = arith.constant 4 : i32
    %210 = vector.broadcast %c4_i32 : i32 to vector<8x1xi32>
    %211 = arith.cmpi sgt, %10, %210 : vector<8x1xi32>
    %212 = vector.shape_cast %211 : vector<8x1xi1> to vector<8x1xi1>
    %213 = vector.broadcast %212 : vector<8x1xi1> to vector<8x128xi1>
    %214 = arith.select %213, %209, %172 : vector<8x128xi1>, vector<8x128xf32>
    %cst_61 = arith.constant 0.000000e+00 : f32
    %215 = vector.shape_cast %211 : vector<8x1xi1> to vector<8x1xi1>
    %216 = vector.broadcast %215 : vector<8x1xi1> to vector<8x128xi1>
    %217 = vector.broadcast %cst_61 : f32 to vector<8x128xf32>
    %218 = arith.select %216, %209, %217 : vector<8x128xi1>, vector<8x128xf32>
    %c4 = arith.constant 4 : index
    %c0_62 = arith.constant 0 : index
    %c0_63 = arith.constant 0 : index
    %219 = vector.load %arg6[%c4, %c0_62, %c0_63] : memref<8x8x128xf32, #tpu.memory_space<vmem>>, vector<1x8x128xf32>
    %220 = vector.shape_cast %219 : vector<1x8x128xf32> to vector<8x128xf32>
    %221 = vector.shape_cast %218 : vector<8x128xf32> to vector<1x8x128xf32>
    tpu.vector_store %arg6[%c4, %c0_62, %c0_63], %221 {strides = array<i32>} : memref<8x8x128xf32, #tpu.memory_space<vmem>>, vector<1x8x128xf32>,
    %c40 = arith.constant 40 : index
    %c0_64 = arith.constant 0 : index
    %222 = vector.load %arg8[%c40, %c0_64] : memref<64x384xf32, #tpu.memory_space<vmem>>, vector<8x384xf32>
    %c0_65 = arith.constant 0 : index
    %c0_66 = arith.constant 0 : index
    %223 = vector.load %arg3[%c0_65, %c0_66] : memref<128x384xf32, #tpu.memory_space<vmem>>, vector<128x384xf32>
    %cst_67 = arith.constant dense<0.000000e+00> : vector<8x384xf32>
    %224 = tpu.matmul %214, %223, %cst_67 {dimension_numbers = #tpu.dot_dimension_numbers<[1], [0], [0], [1], [0, 0, 1, 1], [], []>} : vector<8x128xf32>, vector<128x384xf32>, vector<8x384xf32> -> vector<8x384xf32>
    %225 = vector.extract_strided_slice %222 {offsets = [0, 0], sizes = [8, 128], strides = [1, 1]} : vector<8x384xf32> to vector<8x128xf32>
    %226 = vector.extract_strided_slice %224 {offsets = [0, 0], sizes = [8, 128], strides = [1, 1]} : vector<8x384xf32> to vector<8x128xf32>
    %227 = arith.addf %225, %226 : vector<8x128xf32>
    %228 = arith.negf %227 : vector<8x128xf32>
    %229 = math.exp %228 : vector<8x128xf32>
    %cst_68 = arith.constant 1.000000e+00 : f32
    %230 = vector.broadcast %cst_68 : f32 to vector<8x128xf32>
    %231 = arith.addf %230, %229 : vector<8x128xf32>
    %232 = arith.divf %230, %231 : vector<8x128xf32>
    %233 = vector.extract_strided_slice %222 {offsets = [0, 128], sizes = [8, 128], strides = [1, 1]} : vector<8x384xf32> to vector<8x128xf32>
    %234 = vector.extract_strided_slice %224 {offsets = [0, 128], sizes = [8, 128], strides = [1, 1]} : vector<8x384xf32> to vector<8x128xf32>
    %235 = arith.addf %233, %234 : vector<8x128xf32>
    %236 = arith.negf %235 : vector<8x128xf32>
    %237 = math.exp %236 : vector<8x128xf32>
    %cst_69 = arith.constant 1.000000e+00 : f32
    %238 = vector.broadcast %cst_69 : f32 to vector<8x128xf32>
    %239 = arith.addf %238, %237 : vector<8x128xf32>
    %240 = arith.divf %238, %239 : vector<8x128xf32>
    %241 = vector.extract_strided_slice %222 {offsets = [0, 256], sizes = [8, 128], strides = [1, 1]} : vector<8x384xf32> to vector<8x128xf32>
    %242 = vector.extract_strided_slice %224 {offsets = [0, 256], sizes = [8, 128], strides = [1, 1]} : vector<8x384xf32> to vector<8x128xf32>
    %243 = arith.addf %242, %9 : vector<8x128xf32>
    %244 = arith.mulf %232, %243 : vector<8x128xf32>
    %245 = arith.addf %241, %244 : vector<8x128xf32>
    %246 = math.tanh %245 : vector<8x128xf32>
    %cst_70 = arith.constant 1.000000e+00 : f32
    %247 = vector.broadcast %cst_70 : f32 to vector<8x128xf32>
    %248 = arith.subf %247, %240 : vector<8x128xf32>
    %249 = arith.mulf %248, %246 : vector<8x128xf32>
    %250 = arith.mulf %240, %214 : vector<8x128xf32>
    %251 = arith.addf %249, %250 : vector<8x128xf32>
    %c5_i32 = arith.constant 5 : i32
    %252 = vector.broadcast %c5_i32 : i32 to vector<8x1xi32>
    %253 = arith.cmpi sgt, %10, %252 : vector<8x1xi32>
    %254 = vector.shape_cast %253 : vector<8x1xi1> to vector<8x1xi1>
    %255 = vector.broadcast %254 : vector<8x1xi1> to vector<8x128xi1>
    %256 = arith.select %255, %251, %214 : vector<8x128xi1>, vector<8x128xf32>
    %cst_71 = arith.constant 0.000000e+00 : f32
    %257 = vector.shape_cast %253 : vector<8x1xi1> to vector<8x1xi1>
    %258 = vector.broadcast %257 : vector<8x1xi1> to vector<8x128xi1>
    %259 = vector.broadcast %cst_71 : f32 to vector<8x128xf32>
    %260 = arith.select %258, %251, %259 : vector<8x128xi1>, vector<8x128xf32>
    %c5 = arith.constant 5 : index
    %c0_72 = arith.constant 0 : index
    %c0_73 = arith.constant 0 : index
    %261 = vector.load %arg6[%c5, %c0_72, %c0_73] : memref<8x8x128xf32, #tpu.memory_space<vmem>>, vector<1x8x128xf32>
    %262 = vector.shape_cast %261 : vector<1x8x128xf32> to vector<8x128xf32>
    %263 = vector.shape_cast %260 : vector<8x128xf32> to vector<1x8x128xf32>
    tpu.vector_store %arg6[%c5, %c0_72, %c0_73], %263 {strides = array<i32>} : memref<8x8x128xf32, #tpu.memory_space<vmem>>, vector<1x8x128xf32>,
    %c48 = arith.constant 48 : index
    %c0_74 = arith.constant 0 : index
    %264 = vector.load %arg8[%c48, %c0_74] : memref<64x384xf32, #tpu.memory_space<vmem>>, vector<8x384xf32>
    %c0_75 = arith.constant 0 : index
    %c0_76 = arith.constant 0 : index
    %265 = vector.load %arg3[%c0_75, %c0_76] : memref<128x384xf32, #tpu.memory_space<vmem>>, vector<128x384xf32>
    %cst_77 = arith.constant dense<0.000000e+00> : vector<8x384xf32>
    %266 = tpu.matmul %256, %265, %cst_77 {dimension_numbers = #tpu.dot_dimension_numbers<[1], [0], [0], [1], [0, 0, 1, 1], [], []>} : vector<8x128xf32>, vector<128x384xf32>, vector<8x384xf32> -> vector<8x384xf32>
    %267 = vector.extract_strided_slice %264 {offsets = [0, 0], sizes = [8, 128], strides = [1, 1]} : vector<8x384xf32> to vector<8x128xf32>
    %268 = vector.extract_strided_slice %266 {offsets = [0, 0], sizes = [8, 128], strides = [1, 1]} : vector<8x384xf32> to vector<8x128xf32>
    %269 = arith.addf %267, %268 : vector<8x128xf32>
    %270 = arith.negf %269 : vector<8x128xf32>
    %271 = math.exp %270 : vector<8x128xf32>
    %cst_78 = arith.constant 1.000000e+00 : f32
    %272 = vector.broadcast %cst_78 : f32 to vector<8x128xf32>
    %273 = arith.addf %272, %271 : vector<8x128xf32>
    %274 = arith.divf %272, %273 : vector<8x128xf32>
    %275 = vector.extract_strided_slice %264 {offsets = [0, 128], sizes = [8, 128], strides = [1, 1]} : vector<8x384xf32> to vector<8x128xf32>
    %276 = vector.extract_strided_slice %266 {offsets = [0, 128], sizes = [8, 128], strides = [1, 1]} : vector<8x384xf32> to vector<8x128xf32>
    %277 = arith.addf %275, %276 : vector<8x128xf32>
    %278 = arith.negf %277 : vector<8x128xf32>
    %279 = math.exp %278 : vector<8x128xf32>
    %cst_79 = arith.constant 1.000000e+00 : f32
    %280 = vector.broadcast %cst_79 : f32 to vector<8x128xf32>
    %281 = arith.addf %280, %279 : vector<8x128xf32>
    %282 = arith.divf %280, %281 : vector<8x128xf32>
    %283 = vector.extract_strided_slice %264 {offsets = [0, 256], sizes = [8, 128], strides = [1, 1]} : vector<8x384xf32> to vector<8x128xf32>
    %284 = vector.extract_strided_slice %266 {offsets = [0, 256], sizes = [8, 128], strides = [1, 1]} : vector<8x384xf32> to vector<8x128xf32>
    %285 = arith.addf %284, %9 : vector<8x128xf32>
    %286 = arith.mulf %274, %285 : vector<8x128xf32>
    %287 = arith.addf %283, %286 : vector<8x128xf32>
    %288 = math.tanh %287 : vector<8x128xf32>
    %cst_80 = arith.constant 1.000000e+00 : f32
    %289 = vector.broadcast %cst_80 : f32 to vector<8x128xf32>
    %290 = arith.subf %289, %282 : vector<8x128xf32>
    %291 = arith.mulf %290, %288 : vector<8x128xf32>
    %292 = arith.mulf %282, %256 : vector<8x128xf32>
    %293 = arith.addf %291, %292 : vector<8x128xf32>
    %c6_i32 = arith.constant 6 : i32
    %294 = vector.broadcast %c6_i32 : i32 to vector<8x1xi32>
    %295 = arith.cmpi sgt, %10, %294 : vector<8x1xi32>
    %296 = vector.shape_cast %295 : vector<8x1xi1> to vector<8x1xi1>
    %297 = vector.broadcast %296 : vector<8x1xi1> to vector<8x128xi1>
    %298 = arith.select %297, %293, %256 : vector<8x128xi1>, vector<8x128xf32>
    %cst_81 = arith.constant 0.000000e+00 : f32
    %299 = vector.shape_cast %295 : vector<8x1xi1> to vector<8x1xi1>
    %300 = vector.broadcast %299 : vector<8x1xi1> to vector<8x128xi1>
    %301 = vector.broadcast %cst_81 : f32 to vector<8x128xf32>
    %302 = arith.select %300, %293, %301 : vector<8x128xi1>, vector<8x128xf32>
    %c6 = arith.constant 6 : index
    %c0_82 = arith.constant 0 : index
    %c0_83 = arith.constant 0 : index
    %303 = vector.load %arg6[%c6, %c0_82, %c0_83] : memref<8x8x128xf32, #tpu.memory_space<vmem>>, vector<1x8x128xf32>
    %304 = vector.shape_cast %303 : vector<1x8x128xf32> to vector<8x128xf32>
    %305 = vector.shape_cast %302 : vector<8x128xf32> to vector<1x8x128xf32>
    tpu.vector_store %arg6[%c6, %c0_82, %c0_83], %305 {strides = array<i32>} : memref<8x8x128xf32, #tpu.memory_space<vmem>>, vector<1x8x128xf32>,
    %c56 = arith.constant 56 : index
    %c0_84 = arith.constant 0 : index
    %306 = vector.load %arg8[%c56, %c0_84] : memref<64x384xf32, #tpu.memory_space<vmem>>, vector<8x384xf32>
    %c0_85 = arith.constant 0 : index
    %c0_86 = arith.constant 0 : index
    %307 = vector.load %arg3[%c0_85, %c0_86] : memref<128x384xf32, #tpu.memory_space<vmem>>, vector<128x384xf32>
    %cst_87 = arith.constant dense<0.000000e+00> : vector<8x384xf32>
    %308 = tpu.matmul %298, %307, %cst_87 {dimension_numbers = #tpu.dot_dimension_numbers<[1], [0], [0], [1], [0, 0, 1, 1], [], []>} : vector<8x128xf32>, vector<128x384xf32>, vector<8x384xf32> -> vector<8x384xf32>
    %309 = vector.extract_strided_slice %306 {offsets = [0, 0], sizes = [8, 128], strides = [1, 1]} : vector<8x384xf32> to vector<8x128xf32>
    %310 = vector.extract_strided_slice %308 {offsets = [0, 0], sizes = [8, 128], strides = [1, 1]} : vector<8x384xf32> to vector<8x128xf32>
    %311 = arith.addf %309, %310 : vector<8x128xf32>
    %312 = arith.negf %311 : vector<8x128xf32>
    %313 = math.exp %312 : vector<8x128xf32>
    %cst_88 = arith.constant 1.000000e+00 : f32
    %314 = vector.broadcast %cst_88 : f32 to vector<8x128xf32>
    %315 = arith.addf %314, %313 : vector<8x128xf32>
    %316 = arith.divf %314, %315 : vector<8x128xf32>
    %317 = vector.extract_strided_slice %306 {offsets = [0, 128], sizes = [8, 128], strides = [1, 1]} : vector<8x384xf32> to vector<8x128xf32>
    %318 = vector.extract_strided_slice %308 {offsets = [0, 128], sizes = [8, 128], strides = [1, 1]} : vector<8x384xf32> to vector<8x128xf32>
    %319 = arith.addf %317, %318 : vector<8x128xf32>
    %320 = arith.negf %319 : vector<8x128xf32>
    %321 = math.exp %320 : vector<8x128xf32>
    %cst_89 = arith.constant 1.000000e+00 : f32
    %322 = vector.broadcast %cst_89 : f32 to vector<8x128xf32>
    %323 = arith.addf %322, %321 : vector<8x128xf32>
    %324 = arith.divf %322, %323 : vector<8x128xf32>
    %325 = vector.extract_strided_slice %306 {offsets = [0, 256], sizes = [8, 128], strides = [1, 1]} : vector<8x384xf32> to vector<8x128xf32>
    %326 = vector.extract_strided_slice %308 {offsets = [0, 256], sizes = [8, 128], strides = [1, 1]} : vector<8x384xf32> to vector<8x128xf32>
    %327 = arith.addf %326, %9 : vector<8x128xf32>
    %328 = arith.mulf %316, %327 : vector<8x128xf32>
    %329 = arith.addf %325, %328 : vector<8x128xf32>
    %330 = math.tanh %329 : vector<8x128xf32>
    %cst_90 = arith.constant 1.000000e+00 : f32
    %331 = vector.broadcast %cst_90 : f32 to vector<8x128xf32>
    %332 = arith.subf %331, %324 : vector<8x128xf32>
    %333 = arith.mulf %332, %330 : vector<8x128xf32>
    %334 = arith.mulf %324, %298 : vector<8x128xf32>
    %335 = arith.addf %333, %334 : vector<8x128xf32>
    %c7_i32 = arith.constant 7 : i32
    %336 = vector.broadcast %c7_i32 : i32 to vector<8x1xi32>
    %337 = arith.cmpi sgt, %10, %336 : vector<8x1xi32>
    %338 = vector.shape_cast %337 : vector<8x1xi1> to vector<8x1xi1>
    %339 = vector.broadcast %338 : vector<8x1xi1> to vector<8x128xi1>
    %340 = arith.select %339, %335, %298 : vector<8x128xi1>, vector<8x128xf32>
    %cst_91 = arith.constant 0.000000e+00 : f32
    %341 = vector.shape_cast %337 : vector<8x1xi1> to vector<8x1xi1>
    %342 = vector.broadcast %341 : vector<8x1xi1> to vector<8x128xi1>
    %343 = vector.broadcast %cst_91 : f32 to vector<8x128xf32>
    %344 = arith.select %342, %335, %343 : vector<8x128xi1>, vector<8x128xf32>
    %c7 = arith.constant 7 : index
    %c0_92 = arith.constant 0 : index
    %c0_93 = arith.constant 0 : index
    %345 = vector.load %arg6[%c7, %c0_92, %c0_93] : memref<8x8x128xf32, #tpu.memory_space<vmem>>, vector<1x8x128xf32>
    %346 = vector.shape_cast %345 : vector<1x8x128xf32> to vector<8x128xf32>
    %347 = vector.shape_cast %344 : vector<8x128xf32> to vector<1x8x128xf32>
    tpu.vector_store %arg6[%c7, %c0_92, %c0_93], %347 {strides = array<i32>} : memref<8x8x128xf32, #tpu.memory_space<vmem>>, vector<1x8x128xf32>,
    %c0_94 = arith.constant 0 : index
    %c0_95 = arith.constant 0 : index
    %348 = vector.load %arg7[%c0_94, %c0_95] : memref<8x128xf32, #tpu.memory_space<vmem>>, vector<8x128xf32>
    tpu.vector_store %arg7[%c0_94, %c0_95], %340 {strides = array<i32>} : memref<8x128xf32, #tpu.memory_space<vmem>>, vector<8x128xf32>,
    return
  }
}

</mosaic_0001>

<llo_original>
// kernel: tpu_custom_call.1
$region0: #{tpu_custom_call.1}
  #allocation0 [shape = 'u32[]', space=smem, size = 0x4, offset = 0x4, fixed_abs, tag = 'smem constant byte address 0x4 - core index']
  #allocation1 [shape = 'u32[72,128]{1,0:T(1,128)}', space=vmem, size = 0x9000, scoped, tag = 'internal scratch']
  #allocation2 [shape = 'f32[64,384]{1,0:T(8,128)}', space=vmem, size = 0x18000, scoped, tag = 'scratch operand']
  %s0 = inlined_call_operand.vmem [shape: s32[8,1], index: 0, kind: input, shape index: {}]
  %s1 = inlined_call_operand.hbm [shape: f32[64,128], index: 1, kind: input, shape index: {}]
  %s2 = inlined_call_operand.hbm [shape: f32[128,384], index: 2, kind: input, shape index: {}]
  %s3 = inlined_call_operand.hbm [shape: f32[128,384], index: 3, kind: input, shape index: {}]
  %s4 = inlined_call_operand.vmem [shape: f32[1,384], index: 4, kind: input, shape index: {}]
  %s5 = inlined_call_operand.vmem [shape: f32[1,128], index: 5, kind: input, shape index: {}]
  %s6 = inlined_call_operand.hbm [shape: f32[8,8,128], index: 6, kind: output, shape index: {0}]
  %s7 = inlined_call_operand.hbm [shape: f32[8,128], index: 7, kind: output, shape index: {1}]
  %8 = xla_tuple %s6, %s7
  %s9 = sld [smem:[#allocation0]]
  $region54: #{tpu_custom_call.1} parent=0
    _
  %s11 = ssub.s32 1, %s9
  %s12 = scalar_select 0, %s11, %s9
  $region1: #{tpu_custom_call.1} parent=0
    #allocation3 [shape = 'u8[32768]{0}', space=vmem, size = 0x8000, scoped, tag = 'input window, operand 1, single buffered']
    #allocation4 [shape = 's32[1]{0}', space=sflag, size = 0x4, scoped, tag = 'scoped memory for tpu_custom_call.1']
    #allocation5 [shape = 's32[1]{0}', space=sflag, size = 0x4, scoped, tag = 'scoped memory for tpu_custom_call.1']
    #allocation6 [shape = 'u8[196608]{0}', space=vmem, size = 0x30000, scoped, tag = 'input window, operand 2, single buffered']
    #allocation7 [shape = 's32[1]{0}', space=sflag, size = 0x4, scoped, tag = 'scoped memory for tpu_custom_call.1']
    #allocation8 [shape = 'u8[196608]{0}', space=vmem, size = 0x30000, scoped, tag = 'input window, operand 3, single buffered']
    #allocation9 [shape = 'u8[32768]{0}', space=vmem, size = 0x8000, scoped, tag = 'output window, operand 0, single buffered']
    #allocation10 [shape = 'u8[4096]{0}', space=vmem, size = 0x1000, scoped, tag = 'output window, operand 1, single buffered']
    #allocation11 [shape = 's32[1]{0}', space=sflag, size = 0x4, scoped, tag = 'scoped memory for tpu_custom_call.1']
    %13 = vsyncpa [#allocation4], 0
    %14 = vsyncpa [#allocation7], 0
    %15 = vsyncpa [#allocation5], 0
    %16 = vsyncpa [#allocation11], 0
    // Predicated region
    $region2: #{tpu_custom_call.1} parent=1 // pred_check
      _
    $region3: #{tpu_custom_call.1} parent=1 // pred_check_branch
      %18 = sbr.rel (0) target = $region5
    $region4: #{tpu_custom_call.1} parent=1 // pred_region
      _
    $region5: #{tpu_custom_call.1} parent=1 // pred_fallthru
      _
    // Predicated region
    $region6: #{tpu_custom_call.1} parent=1 // pred_check
      _
    $region7: #{tpu_custom_call.1} parent=1 // pred_check_branch
      %20 = sbr.rel (0) target = $region9
    $region8: #{tpu_custom_call.1} parent=1 // pred_region
      %22 = vsyncadd [#allocation4], 0
      %s23 = sshll.u32 %s1, 4
      %s24 = int_to_ptr.hbm [resolvable:$true] %s23
      %s25 = sshll.u32 [#allocation3], 4
      %s26 = int_to_ptr.vmem [resolvable:$true] %s25
      %31 = dma.hbm_to_vmem [thread:$0]  %s24, 1024, %s26, [#allocation4], 128, 128, 8
    $region9: #{tpu_custom_call.1} parent=1 // pred_fallthru
      _
    // Predicated region
    $region10: #{tpu_custom_call.1} parent=1 // pred_check
      _
    $region11: #{tpu_custom_call.1} parent=1 // pred_check_branch
      %33 = sbr.rel (0) target = $region13
    $region12: #{tpu_custom_call.1} parent=1 // pred_region
      %35 = vsyncadd [#allocation7], 0
      %s36 = sshll.u32 %s2, 4
      %s37 = int_to_ptr.hbm [resolvable:$true] %s36
      %s38 = sshll.u32 [#allocation6], 4
      %s39 = int_to_ptr.vmem [resolvable:$true] %s38
      %44 = dma.hbm_to_vmem [thread:$0]  %s37, 6144, %s39, [#allocation7], 384, 384, 24
    $region13: #{tpu_custom_call.1} parent=1 // pred_fallthru
      _
    // Predicated region
    $region14: #{tpu_custom_call.1} parent=1 // pred_check
      _
    $region15: #{tpu_custom_call.1} parent=1 // pred_check_branch
      %46 = sbr.rel (0) target = $region17
    $region16: #{tpu_custom_call.1} parent=1 // pred_region
      %48 = vsyncadd [#allocation7], 0
      %s49 = sshll.u32 %s3, 4
      %s50 = int_to_ptr.hbm [resolvable:$true] %s49
      %s51 = sshll.u32 [#allocation8], 4
      %s52 = int_to_ptr.vmem [resolvable:$true] %s51
      %57 = dma.hbm_to_vmem [thread:$0]  %s50, 6144, %s52, [#allocation7], 384, 384, 24
    $region17: #{tpu_custom_call.1} parent=1 // pred_fallthru
      _
    // Predicated region
    $region18: #{tpu_custom_call.1} parent=1 // pred_check
      _
    $region19: #{tpu_custom_call.1} parent=1 // pred_check_branch
      %59 = sbr.rel (0) target = $region21
    $region20: #{tpu_custom_call.1} parent=1 // pred_region
      _
    $region21: #{tpu_custom_call.1} parent=1 // pred_fallthru
      _
    // Predicated region
    $region22: #{tpu_custom_call.1} parent=1 // pred_check
      _
    $region23: #{tpu_custom_call.1} parent=1 // pred_check_branch
      %61 = sbr.rel (0) target = $region25
    $region24: #{tpu_custom_call.1} parent=1 // pred_region
      _
    $region25: #{tpu_custom_call.1} parent=1 // pred_fallthru
      _
    // Predicated region
    $region26: #{tpu_custom_call.1} parent=1 // pred_check
      _
    $region27: #{tpu_custom_call.1} parent=1 // pred_check_branch
      %63 = sbr.rel (0) target = $region29
    $region28: #{tpu_custom_call.1} parent=1 // pred_region
      %65 = dma.done [#allocation4], 1024
    $region29: #{tpu_custom_call.1} parent=1 // pred_fallthru
      _
    // Predicated region
    $region30: #{tpu_custom_call.1} parent=1 // pred_check
      _
    $region31: #{tpu_custom_call.1} parent=1 // pred_check_branch
      %67 = sbr.rel (0) target = $region33
    $region32: #{tpu_custom_call.1} parent=1 // pred_region
      %69 = dma.done [#allocation7], 6144
    $region33: #{tpu_custom_call.1} parent=1 // pred_fallthru
      _
    // Predicated region
    $region34: #{tpu_custom_call.1} parent=1 // pred_check
      _
    $region35: #{tpu_custom_call.1} parent=1 // pred_check_branch
      %71 = sbr.rel (0) target = $region37
    $region36: #{tpu_custom_call.1} parent=1 // pred_region
      %73 = dma.done [#allocation7], 6144
    $region37: #{tpu_custom_call.1} parent=1 // pred_fallthru
      _
    %v74 = vld [vmem:[#allocation3] sm:$0xff]
    %v75 = vld [vmem:[#allocation3 + $0x8] sm:$0xff]
    %v76 = vld [vmem:[#allocation3 + $0x10] sm:$0xff]
    %v77 = vld [vmem:[#allocation3 + $0x18] sm:$0xff]
    %v78 = vld [vmem:[#allocation3 + $0x20] sm:$0xff]
    %v79 = vld [vmem:[#allocation3 + $0x28] sm:$0xff]
    %v80 = vld [vmem:[#allocation3 + $0x30] sm:$0xff]
    %v81 = vld [vmem:[#allocation3 + $0x38] sm:$0xff]
    %v82 = vld [vmem:[#allocation6] sm:$0xff]
    %v83 = vld [vmem:[#allocation6 + $0x8] sm:$0xff]
    %v84 = vld [vmem:[#allocation6 + $0x10] sm:$0xff]
    %v85 = vld [vmem:[#allocation6 + $0x18] sm:$0xff]
    %v86 = vld [vmem:[#allocation6 + $0x20] sm:$0xff]
    %v87 = vld [vmem:[#allocation6 + $0x28] sm:$0xff]
    %v88 = vld [vmem:[#allocation6 + $0x30] sm:$0xff]
    %v89 = vld [vmem:[#allocation6 + $0x38] sm:$0xff]
    %v90 = vld [vmem:[#allocation6 + $0x40] sm:$0xff]
    %v91 = vld [vmem:[#allocation6 + $0x48] sm:$0xff]
    %v92 = vld [vmem:[#allocation6 + $0x50] sm:$0xff]
    %v93 = vld [vmem:[#allocation6 + $0x58] sm:$0xff]
    %v94 = vld [vmem:[#allocation6 + $0x60] sm:$0xff]
    %v95 = vld [vmem:[#allocation6 + $0x68] sm:$0xff]
    %v96 = vld [vmem:[#allocation6 + $0x70] sm:$0xff]
    %v97 = vld [vmem:[#allocation6 + $0x78] sm:$0xff]
    %v98 = vld [vmem:[#allocation6 + $0x80] sm:$0xff]
    %v99 = vld [vmem:[#allocation6 + $0x88] sm:$0xff]
    %v100 = vld [vmem:[#allocation6 + $0x90] sm:$0xff]
    %v101 = vld [vmem:[#allocation6 + $0x98] sm:$0xff]
    %v102 = vld [vmem:[#allocation6 + $0xa0] sm:$0xff]
    %v103 = vld [vmem:[#allocation6 + $0xa8] sm:$0xff]
    %v104 = vld [vmem:[#allocation6 + $0xb0] sm:$0xff]
    %v105 = vld [vmem:[#allocation6 + $0xb8] sm:$0xff]
    %v106 = vld [vmem:[#allocation6 + $0xc0] sm:$0xff]
    %v107 = vld [vmem:[#allocation6 + $0xc8] sm:$0xff]
    %v108 = vld [vmem:[#allocation6 + $0xd0] sm:$0xff]
    %v109 = vld [vmem:[#allocation6 + $0xd8] sm:$0xff]
    %v110 = vld [vmem:[#allocation6 + $0xe0] sm:$0xff]
    %v111 = vld [vmem:[#allocation6 + $0xe8] sm:$0xff]
    %v112 = vld [vmem:[#allocation6 + $0xf0] sm:$0xff]
    %v113 = vld [vmem:[#allocation6 + $0xf8] sm:$0xff]
    %v114 = vld [vmem:[#allocation6 + $0x100] sm:$0xff]
    %v115 = vld [vmem:[#allocation6 + $0x108] sm:$0xff]
    %v116 = vld [vmem:[#allocation6 + $0x110] sm:$0xff]
    %v117 = vld [vmem:[#allocation6 + $0x118] sm:$0xff]
    %v118 = vld [vmem:[#allocation6 + $0x120] sm:$0xff]
    %v119 = vld [vmem:[#allocation6 + $0x128] sm:$0xff]
    %v120 = vld [vmem:[#allocation6 + $0x130] sm:$0xff]
    %v121 = vld [vmem:[#allocation6 + $0x138] sm:$0xff]
    %v122 = vld [vmem:[#allocation6 + $0x140] sm:$0xff]
    %v123 = vld [vmem:[#allocation6 + $0x148] sm:$0xff]
    %v124 = vld [vmem:[#allocation6 + $0x150] sm:$0xff]
    %v125 = vld [vmem:[#allocation6 + $0x158] sm:$0xff]
    %v126 = vld [vmem:[#allocation6 + $0x160] sm:$0xff]
    %v127 = vld [vmem:[#allocation6 + $0x168] sm:$0xff]
    %v128 = vld [vmem:[#allocation6 + $0x170] sm:$0xff]
    %v129 = vld [vmem:[#allocation6 + $0x178] sm:$0xff]
    %v130 = vld [vmem:[%s4] sm:$0x7]
    %v132 = vperm.slane %v130, 0
    %v133 = vperm.slane %v130, 1
    %v134 = vperm.slane %v130, 2
    %138 = vmatpush.msra.mxu0 %v127
    %139 = vmatpush.msra.mxu0 %v124
    %140 = vmatpush.msra.mxu0 %v121
    %141 = vmatpush.msra.mxu0 %v118
    %142 = vmatpush.msra.mxu0 %v115
    %143 = vmatpush.msra.mxu0 %v112
    %144 = vmatpush.msra.mxu0 %v109
    %145 = vmatpush.msra.mxu0 %v106
    %146 = vmatpush.msra.mxu0 %v103
    %147 = vmatpush.msra.mxu0 %v100
    %148 = vmatpush.msra.mxu0 %v97
    %149 = vmatpush.msra.mxu0 %v94
    %150 = vmatpush.msra.mxu0 %v91
    %151 = vmatpush.msra.mxu0 %v88
    %152 = vmatpush.msra.mxu0 %v85
    %153 = vmatpush.msra.mxu0 %v82
    %154 = vmatmul.f32.gmra.mxu0 %v74
    %v155 = vpop.f32.mrf.mxu0
    %v156 = vadd.f32 %v132, %v155
    %157 = vmatmul.f32.gmra.mxu0 %v75
    %v158 = vpop.f32.mrf.mxu0
    %v159 = vadd.f32 %v132, %v158
    %160 = vmatmul.f32.gmra.mxu0 %v76
    %v161 = vpop.f32.mrf.mxu0
    %v162 = vadd.f32 %v132, %v161
    %163 = vmatmul.f32.gmra.mxu0 %v77
    %v164 = vpop.f32.mrf.mxu0
    %v165 = vadd.f32 %v132, %v164
    %166 = vmatmul.f32.gmra.mxu0 %v78
    %v167 = vpop.f32.mrf.mxu0
    %v168 = vadd.f32 %v132, %v167
    %169 = vmatmul.f32.gmra.mxu0 %v79
    %v170 = vpop.f32.mrf.mxu0
    %v171 = vadd.f32 %v132, %v170
    %172 = vmatmul.f32.gmra.mxu0 %v80
    %v173 = vpop.f32.mrf.mxu0
    %v174 = vadd.f32 %v132, %v173
    %175 = vmatmul.f32.gmra.mxu0 %v81
    %v176 = vpop.f32.mrf.mxu0
    %v177 = vadd.f32 %v132, %v176
    %178 = vdwg.mxu0
    %179 = vmatpush.msra.mxu0 %v128
    %180 = vmatpush.msra.mxu0 %v125
    %181 = vmatpush.msra.mxu0 %v122
    %182 = vmatpush.msra.mxu0 %v119
    %183 = vmatpush.msra.mxu0 %v116
    %184 = vmatpush.msra.mxu0 %v113
    %185 = vmatpush.msra.mxu0 %v110
    %186 = vmatpush.msra.mxu0 %v107
    %187 = vmatpush.msra.mxu0 %v104
    %188 = vmatpush.msra.mxu0 %v101
    %189 = vmatpush.msra.mxu0 %v98
    %190 = vmatpush.msra.mxu0 %v95
    %191 = vmatpush.msra.mxu0 %v92
    %192 = vmatpush.msra.mxu0 %v89
    %193 = vmatpush.msra.mxu0 %v86
    %194 = vmatpush.msra.mxu0 %v83
    %195 = vmatmul.f32.gmra.mxu0 %v74
    %v196 = vpop.f32.mrf.mxu0
    %v197 = vadd.f32 %v133, %v196
    %198 = vmatmul.f32.gmra.mxu0 %v75
    %v199 = vpop.f32.mrf.mxu0
    %v200 = vadd.f32 %v133, %v199
    %201 = vmatmul.f32.gmra.mxu0 %v76
    %v202 = vpop.f32.mrf.mxu0
    %v203 = vadd.f32 %v133, %v202
    %204 = vmatmul.f32.gmra.mxu0 %v77
    %v205 = vpop.f32.mrf.mxu0
    %v206 = vadd.f32 %v133, %v205
    %207 = vmatmul.f32.gmra.mxu0 %v78
    %v208 = vpop.f32.mrf.mxu0
    %v209 = vadd.f32 %v133, %v208
    %210 = vmatmul.f32.gmra.mxu0 %v79
    %v211 = vpop.f32.mrf.mxu0
    %v212 = vadd.f32 %v133, %v211
    %213 = vmatmul.f32.gmra.mxu0 %v80
    %v214 = vpop.f32.mrf.mxu0
    %v215 = vadd.f32 %v133, %v214
    %216 = vmatmul.f32.gmra.mxu0 %v81
    %v217 = vpop.f32.mrf.mxu0
    %v218 = vadd.f32 %v133, %v217
    %219 = vdwg.mxu0
    %220 = vmatpush.msra.mxu0 %v129
    %221 = vmatpush.msra.mxu0 %v126
    %222 = vmatpush.msra.mxu0 %v123
    %223 = vmatpush.msra.mxu0 %v120
    %224 = vmatpush.msra.mxu0 %v117
    %225 = vmatpush.msra.mxu0 %v114
    %226 = vmatpush.msra.mxu0 %v111
    %227 = vmatpush.msra.mxu0 %v108
    %228 = vmatpush.msra.mxu0 %v105
    %229 = vmatpush.msra.mxu0 %v102
    %230 = vmatpush.msra.mxu0 %v99
    %231 = vmatpush.msra.mxu0 %v96
    %232 = vmatpush.msra.mxu0 %v93
    %233 = vmatpush.msra.mxu0 %v90
    %234 = vmatpush.msra.mxu0 %v87
    %235 = vmatpush.msra.mxu0 %v84
    %236 = vmatmul.f32.gmra.mxu0 %v74
    %v237 = vpop.f32.mrf.mxu0
    %v238 = vadd.f32 %v134, %v237
    %239 = vmatmul.f32.gmra.mxu0 %v75
    %v240 = vpop.f32.mrf.mxu0
    %v241 = vadd.f32 %v134, %v240
    %242 = vmatmul.f32.gmra.mxu0 %v76
    %v243 = vpop.f32.mrf.mxu0
    %v244 = vadd.f32 %v134, %v243
    %245 = vmatmul.f32.gmra.mxu0 %v77
    %v246 = vpop.f32.mrf.mxu0
    %v247 = vadd.f32 %v134, %v246
    %248 = vmatmul.f32.gmra.mxu0 %v78
    %v249 = vpop.f32.mrf.mxu0
    %v250 = vadd.f32 %v134, %v249
    %251 = vmatmul.f32.gmra.mxu0 %v79
    %v252 = vpop.f32.mrf.mxu0
    %v253 = vadd.f32 %v134, %v252
    %254 = vmatmul.f32.gmra.mxu0 %v80
    %v255 = vpop.f32.mrf.mxu0
    %v256 = vadd.f32 %v134, %v255
    %257 = vmatmul.f32.gmra.mxu0 %v81
    %v258 = vpop.f32.mrf.mxu0
    %v259 = vadd.f32 %v134, %v258
    %260 = vdwg.mxu0
    %261 = vst [vmem:[#allocation2] sm:$0xff] %v156
    %262 = vst [vmem:[#allocation2 + $0x8] sm:$0xff] %v197
    %263 = vst [vmem:[#allocation2 + $0x10] sm:$0xff] %v238
    %264 = vst [vmem:[#allocation2 + $0x18] sm:$0xff] %v159
    %265 = vst [vmem:[#allocation2 + $0x20] sm:$0xff] %v200
    %266 = vst [vmem:[#allocation2 + $0x28] sm:$0xff] %v241
    %267 = vst [vmem:[#allocation2 + $0x30] sm:$0xff] %v162
    %268 = vst [vmem:[#allocation2 + $0x38] sm:$0xff] %v203
    %269 = vst [vmem:[#allocation2 + $0x40] sm:$0xff] %v244
    %270 = vst [vmem:[#allocation2 + $0x48] sm:$0xff] %v165
    %271 = vst [vmem:[#allocation2 + $0x50] sm:$0xff] %v206
    %272 = vst [vmem:[#allocation2 + $0x58] sm:$0xff] %v247
    %273 = vst [vmem:[#allocation2 + $0x60] sm:$0xff] %v168
    %274 = vst [vmem:[#allocation2 + $0x68] sm:$0xff] %v209
    %275 = vst [vmem:[#allocation2 + $0x70] sm:$0xff] %v250
    %276 = vst [vmem:[#allocation2 + $0x78] sm:$0xff] %v171
    %277 = vst [vmem:[#allocation2 + $0x80] sm:$0xff] %v212
    %278 = vst [vmem:[#allocation2 + $0x88] sm:$0xff] %v253
    %279 = vst [vmem:[#allocation2 + $0x90] sm:$0xff] %v174
    %280 = vst [vmem:[#allocation2 + $0x98] sm:$0xff] %v215
    %281 = vst [vmem:[#allocation2 + $0xa0] sm:$0xff] %v256
    %282 = vst [vmem:[#allocation2 + $0xa8] sm:$0xff] %v177
    %283 = vst [vmem:[#allocation2 + $0xb0] sm:$0xff] %v218
    %284 = vst [vmem:[#allocation2 + $0xb8] sm:$0xff] %v259
    %v285 = vld [vmem:[%s5] sm:$0x1]
    %v287 = vperm.slane %v285, 0
    %v289 = vld [vmem:[%s0] sm:$0xff]
    %v290 = vld [vmem:[#allocation2] sm:$0xff]
    %v291 = vld [vmem:[#allocation2 + $0x8] sm:$0xff]
    %v292 = vld [vmem:[#allocation2 + $0x10] sm:$0xff]
    %v293 = vld [vmem:[#allocation8] sm:$0xff]
    %v294 = vld [vmem:[#allocation8 + $0x8] sm:$0xff]
    %v295 = vld [vmem:[#allocation8 + $0x10] sm:$0xff]
    %v296 = vld [vmem:[#allocation8 + $0x18] sm:$0xff]
    %v297 = vld [vmem:[#allocation8 + $0x20] sm:$0xff]
    %v298 = vld [vmem:[#allocation8 + $0x28] sm:$0xff]
    %v299 = vld [vmem:[#allocation8 + $0x30] sm:$0xff]
    %v300 = vld [vmem:[#allocation8 + $0x38] sm:$0xff]
    %v301 = vld [vmem:[#allocation8 + $0x40] sm:$0xff]
    %v302 = vld [vmem:[#allocation8 + $0x48] sm:$0xff]
    %v303 = vld [vmem:[#allocation8 + $0x50] sm:$0xff]
    %v304 = vld [vmem:[#allocation8 + $0x58] sm:$0xff]
    %v305 = vld [vmem:[#allocation8 + $0x60] sm:$0xff]
    %v306 = vld [vmem:[#allocation8 + $0x68] sm:$0xff]
    %v307 = vld [vmem:[#allocation8 + $0x70] sm:$0xff]
    %v308 = vld [vmem:[#allocation8 + $0x78] sm:$0xff]
    %v309 = vld [vmem:[#allocation8 + $0x80] sm:$0xff]
    %v310 = vld [vmem:[#allocation8 + $0x88] sm:$0xff]
    %v311 = vld [vmem:[#allocation8 + $0x90] sm:$0xff]
    %v312 = vld [vmem:[#allocation8 + $0x98] sm:$0xff]
    %v313 = vld [vmem:[#allocation8 + $0xa0] sm:$0xff]
    %v314 = vld [vmem:[#allocation8 + $0xa8] sm:$0xff]
    %v315 = vld [vmem:[#allocation8 + $0xb0] sm:$0xff]
    %v316 = vld [vmem:[#allocation8 + $0xb8] sm:$0xff]
    %v317 = vld [vmem:[#allocation8 + $0xc0] sm:$0xff]
    %v318 = vld [vmem:[#allocation8 + $0xc8] sm:$0xff]
    %v319 = vld [vmem:[#allocation8 + $0xd0] sm:$0xff]
    %v320 = vld [vmem:[#allocation8 + $0xd8] sm:$0xff]
    %v321 = vld [vmem:[#allocation8 + $0xe0] sm:$0xff]
    %v322 = vld [vmem:[#allocation8 + $0xe8] sm:$0xff]
    %v323 = vld [vmem:[#allocation8 + $0xf0] sm:$0xff]
    %v324 = vld [vmem:[#allocation8 + $0xf8] sm:$0xff]
    %v325 = vld [vmem:[#allocation8 + $0x100] sm:$0xff]
    %v326 = vld [vmem:[#allocation8 + $0x108] sm:$0xff]
    %v327 = vld [vmem:[#allocation8 + $0x110] sm:$0xff]
    %v328 = vld [vmem:[#allocation8 + $0x118] sm:$0xff]
    %v329 = vld [vmem:[#allocation8 + $0x120] sm:$0xff]
    %v330 = vld [vmem:[#allocation8 + $0x128] sm:$0xff]
    %v331 = vld [vmem:[#allocation8 + $0x130] sm:$0xff]
    %v332 = vld [vmem:[#allocation8 + $0x138] sm:$0xff]
    %v333 = vld [vmem:[#allocation8 + $0x140] sm:$0xff]
    %v334 = vld [vmem:[#allocation8 + $0x148] sm:$0xff]
    %v335 = vld [vmem:[#allocation8 + $0x150] sm:$0xff]
    %v336 = vld [vmem:[#allocation8 + $0x158] sm:$0xff]
    %v337 = vld [vmem:[#allocation8 + $0x160] sm:$0xff]
    %v338 = vld [vmem:[#allocation8 + $0x168] sm:$0xff]
    %v339 = vld [vmem:[#allocation8 + $0x170] sm:$0xff]
    %v340 = vld [vmem:[#allocation8 + $0x178] sm:$0xff]
    %341 = vmatpush.msra.mxu0 %v338
    %342 = vmatpush.msra.mxu0 %v335
    %343 = vmatpush.msra.mxu0 %v332
    %344 = vmatpush.msra.mxu0 %v329
    %345 = vmatpush.msra.mxu0 %v326
    %346 = vmatpush.msra.mxu0 %v323
    %347 = vmatpush.msra.mxu0 %v320
    %348 = vmatpush.msra.mxu0 %v317
    %349 = vmatpush.msra.mxu0 %v314
    %350 = vmatpush.msra.mxu0 %v311
    %351 = vmatpush.msra.mxu0 %v308
    %352 = vmatpush.msra.mxu0 %v305
    %353 = vmatpush.msra.mxu0 %v302
    %354 = vmatpush.msra.mxu0 %v299
    %355 = vmatpush.msra.mxu0 %v296
    %356 = vmatpush.msra.mxu0 %v293
    %357 = vmatmul.f32.gmra.mxu0 0.0
    %v358 = vpop.f32.mrf.mxu0
    %v359 = vadd.f32 0.0, %v358
    %360 = vdwg.mxu0
    %361 = vmatpush.msra.mxu0 %v339
    %362 = vmatpush.msra.mxu0 %v336
    %363 = vmatpush.msra.mxu0 %v333
    %364 = vmatpush.msra.mxu0 %v330
    %365 = vmatpush.msra.mxu0 %v327
    %366 = vmatpush.msra.mxu0 %v324
    %367 = vmatpush.msra.mxu0 %v321
    %368 = vmatpush.msra.mxu0 %v318
    %369 = vmatpush.msra.mxu0 %v315
    %370 = vmatpush.msra.mxu0 %v312
    %371 = vmatpush.msra.mxu0 %v309
    %372 = vmatpush.msra.mxu0 %v306
    %373 = vmatpush.msra.mxu0 %v303
    %374 = vmatpush.msra.mxu0 %v300
    %375 = vmatpush.msra.mxu0 %v297
    %376 = vmatpush.msra.mxu0 %v294
    %377 = vmatmul.f32.gmra.mxu0 0.0
    %v378 = vpop.f32.mrf.mxu0
    %v379 = vadd.f32 0.0, %v378
    %380 = vdwg.mxu0
    %381 = vmatpush.msra.mxu0 %v340
    %382 = vmatpush.msra.mxu0 %v337
    %383 = vmatpush.msra.mxu0 %v334
    %384 = vmatpush.msra.mxu0 %v331
    %385 = vmatpush.msra.mxu0 %v328
    %386 = vmatpush.msra.mxu0 %v325
    %387 = vmatpush.msra.mxu0 %v322
    %388 = vmatpush.msra.mxu0 %v319
    %389 = vmatpush.msra.mxu0 %v316
    %390 = vmatpush.msra.mxu0 %v313
    %391 = vmatpush.msra.mxu0 %v310
    %392 = vmatpush.msra.mxu0 %v307
    %393 = vmatpush.msra.mxu0 %v304
    %394 = vmatpush.msra.mxu0 %v301
    %395 = vmatpush.msra.mxu0 %v298
    %396 = vmatpush.msra.mxu0 %v295
    %397 = vmatmul.f32.gmra.mxu0 0.0
    %v398 = vpop.f32.mrf.mxu0
    %v399 = vadd.f32 0.0, %v398
    %400 = vdwg.mxu0
    %v401 = vadd.f32 %v290, %v359
    %v402 = vxor.u32 %v401, 2147483648
    %v403 = vmul.f32 %v402, 1.442695
    %v404 = vpow.pop %v403
    %v405 = vadd.f32 %v404, 1.0
    %v406 = vrcp.pop %v405
    %v407 = vmul.f32 %v405, %v406
    %v408 = vsub.f32 1.0, %v407
    %v409 = vmul.f32 %v406, %v408
    %v410 = vadd.f32 %v406, %v409
    %vm411 = vweird.f32 %v405
    %vm412 = vweird.f32 %v406
    %vm413 = vmor %vm411, %vm412
    %v414 = vsel %vm413, %v406, %v410
    %v415 = vand.u32 2147483647, %v405
    %vm416 = vcmp.eq.f32.partialorder %v415, 8.507059e+37
    %v417 = vand.u32 %v405, 2147483648
    %v418 = vor.u32 1.1754944e-38, %v417
    %v419 = vsel %vm416, %v418, %v414
    %v420 = vmul.f32 1.0, %v419
    %v421 = vadd.f32 %v291, %v379
    %v422 = vxor.u32 %v421, 2147483648
    %v423 = vmul.f32 %v422, 1.442695
    %v424 = vpow.pop %v423
    %v425 = vadd.f32 %v424, 1.0
    %v426 = vrcp.pop %v425
    %v427 = vmul.f32 %v425, %v426
    %v428 = vsub.f32 1.0, %v427
    %v429 = vmul.f32 %v426, %v428
    %v430 = vadd.f32 %v426, %v429
    %vm431 = vweird.f32 %v425
    %vm432 = vweird.f32 %v426
    %vm433 = vmor %vm431, %vm432
    %v434 = vsel %vm433, %v426, %v430
    %v435 = vand.u32 2147483647, %v425
    %vm436 = vcmp.eq.f32.partialorder %v435, 8.507059e+37
    %v437 = vand.u32 %v425, 2147483648
    %v438 = vor.u32 1.1754944e-38, %v437
    %v439 = vsel %vm436, %v438, %v434
    %v440 = vmul.f32 1.0, %v439
    %v441 = vadd.f32 %v399, %v287
    %v442 = vmul.f32 %v420, %v441
    %v443 = vadd.f32 %v292, %v442
    %v444 = vtanh.pop %v443
    %v445 = vsub.f32 1.0, %v440
    %v446 = vmul.f32 %v445, %v444
    %v447 = vmul.f32 %v440, 0.0
    %v448 = vadd.f32 %v446, %v447
    %vm449 = vcmp.gt.s32.totalorder %v289, 0
    %v450 = vsel %vm449, 1, 0
    %451 = vset.pattern.permute.xlu0 0
    %452 = vperm.xlu0 %451, %v450
    %v453 = vpop.permute.xlu0 %452
    %vm454 = vcmp.eq.s32.totalorder %v453, 1
    %v455 = vsel %vm454, %v448, 0.0
    %456 = vst [vmem:[#allocation9] sm:$0xff] %v455
    %v457 = vld [vmem:[#allocation2 + $0x18] sm:$0xff]
    %v458 = vld [vmem:[#allocation2 + $0x20] sm:$0xff]
    %v459 = vld [vmem:[#allocation2 + $0x28] sm:$0xff]
    %v460 = vld [vmem:[#allocation8] sm:$0xff]
    %v461 = vld [vmem:[#allocation8 + $0x8] sm:$0xff]
    %v462 = vld [vmem:[#allocation8 + $0x10] sm:$0xff]
    %v463 = vld [vmem:[#allocation8 + $0x18] sm:$0xff]
    %v464 = vld [vmem:[#allocation8 + $0x20] sm:$0xff]
    %v465 = vld [vmem:[#allocation8 + $0x28] sm:$0xff]
    %v466 = vld [vmem:[#allocation8 + $0x30] sm:$0xff]
    %v467 = vld [vmem:[#allocation8 + $0x38] sm:$0xff]
    %v468 = vld [vmem:[#allocation8 + $0x40] sm:$0xff]
    %v469 = vld [vmem:[#allocation8 + $0x48] sm:$0xff]
    %v470 = vld [vmem:[#allocation8 + $0x50] sm:$0xff]
    %v471 = vld [vmem:[#allocation8 + $0x58] sm:$0xff]
    %v472 = vld [vmem:[#allocation8 + $0x60] sm:$0xff]
    %v473 = vld [vmem:[#allocation8 + $0x68] sm:$0xff]
    %v474 = vld [vmem:[#allocation8 + $0x70] sm:$0xff]
    %v475 = vld [vmem:[#allocation8 + $0x78] sm:$0xff]
    %v476 = vld [vmem:[#allocation8 + $0x80] sm:$0xff]
    %v477 = vld [vmem:[#allocation8 + $0x88] sm:$0xff]
    %v478 = vld [vmem:[#allocation8 + $0x90] sm:$0xff]
    %v479 = vld [vmem:[#allocation8 + $0x98] sm:$0xff]
    %v480 = vld [vmem:[#allocation8 + $0xa0] sm:$0xff]
    %v481 = vld [vmem:[#allocation8 + $0xa8] sm:$0xff]
    %v482 = vld [vmem:[#allocation8 + $0xb0] sm:$0xff]
    %v483 = vld [vmem:[#allocation8 + $0xb8] sm:$0xff]
    %v484 = vld [vmem:[#allocation8 + $0xc0] sm:$0xff]
    %v485 = vld [vmem:[#allocation8 + $0xc8] sm:$0xff]
    %v486 = vld [vmem:[#allocation8 + $0xd0] sm:$0xff]
    %v487 = vld [vmem:[#allocation8 + $0xd8] sm:$0xff]
    %v488 = vld [vmem:[#allocation8 + $0xe0] sm:$0xff]
    %v489 = vld [vmem:[#allocation8 + $0xe8] sm:$0xff]
    %v490 = vld [vmem:[#allocation8 + $0xf0] sm:$0xff]
    %v491 = vld [vmem:[#allocation8 + $0xf8] sm:$0xff]
    %v492 = vld [vmem:[#allocation8 + $0x100] sm:$0xff]
    %v493 = vld [vmem:[#allocation8 + $0x108] sm:$0xff]
    %v494 = vld [vmem:[#allocation8 + $0x110] sm:$0xff]
    %v495 = vld [vmem:[#allocation8 + $0x118] sm:$0xff]
    %v496 = vld [vmem:[#allocation8 + $0x120] sm:$0xff]
    %v497 = vld [vmem:[#allocation8 + $0x128] sm:$0xff]
    %v498 = vld [vmem:[#allocation8 + $0x130] sm:$0xff]
    %v499 = vld [vmem:[#allocation8 + $0x138] sm:$0xff]
    %v500 = vld [vmem:[#allocation8 + $0x140] sm:$0xff]
    %v501 = vld [vmem:[#allocation8 + $0x148] sm:$0xff]
    %v502 = vld [vmem:[#allocation8 + $0x150] sm:$0xff]
    %v503 = vld [vmem:[#allocation8 + $0x158] sm:$0xff]
    %v504 = vld [vmem:[#allocation8 + $0x160] sm:$0xff]
    %v505 = vld [vmem:[#allocation8 + $0x168] sm:$0xff]
    %v506 = vld [vmem:[#allocation8 + $0x170] sm:$0xff]
    %v507 = vld [vmem:[#allocation8 + $0x178] sm:$0xff]
    %508 = vmatpush.msra.mxu0 %v505
    %509 = vmatpush.msra.mxu0 %v502
    %510 = vmatpush.msra.mxu0 %v499
    %511 = vmatpush.msra.mxu0 %v496
    %512 = vmatpush.msra.mxu0 %v493
    %513 = vmatpush.msra.mxu0 %v490
    %514 = vmatpush.msra.mxu0 %v487
    %515 = vmatpush.msra.mxu0 %v484
    %516 = vmatpush.msra.mxu0 %v481
    %517 = vmatpush.msra.mxu0 %v478
    %518 = vmatpush.msra.mxu0 %v475
    %519 = vmatpush.msra.mxu0 %v472
    %520 = vmatpush.msra.mxu0 %v469
    %521 = vmatpush.msra.mxu0 %v466
    %522 = vmatpush.msra.mxu0 %v463
    %523 = vmatpush.msra.mxu0 %v460
    %524 = vmatmul.f32.gmra.mxu0 %v455
    %v525 = vpop.f32.mrf.mxu0
    %v526 = vadd.f32 0.0, %v525
    %527 = vdwg.mxu0
    %528 = vmatpush.msra.mxu0 %v506
    %529 = vmatpush.msra.mxu0 %v503
    %530 = vmatpush.msra.mxu0 %v500
    %531 = vmatpush.msra.mxu0 %v497
    %532 = vmatpush.msra.mxu0 %v494
    %533 = vmatpush.msra.mxu0 %v491
    %534 = vmatpush.msra.mxu0 %v488
    %535 = vmatpush.msra.mxu0 %v485
    %536 = vmatpush.msra.mxu0 %v482
    %537 = vmatpush.msra.mxu0 %v479
    %538 = vmatpush.msra.mxu0 %v476
    %539 = vmatpush.msra.mxu0 %v473
    %540 = vmatpush.msra.mxu0 %v470
    %541 = vmatpush.msra.mxu0 %v467
    %542 = vmatpush.msra.mxu0 %v464
    %543 = vmatpush.msra.mxu0 %v461
    %544 = vmatmul.f32.gmra.mxu0 %v455
    %v545 = vpop.f32.mrf.mxu0
    %v546 = vadd.f32 0.0, %v545
    %547 = vdwg.mxu0
    %548 = vmatpush.msra.mxu0 %v507
    %549 = vmatpush.msra.mxu0 %v504
    %550 = vmatpush.msra.mxu0 %v501
    %551 = vmatpush.msra.mxu0 %v498
    %552 = vmatpush.msra.mxu0 %v495
    %553 = vmatpush.msra.mxu0 %v492
    %554 = vmatpush.msra.mxu0 %v489
    %555 = vmatpush.msra.mxu0 %v486
    %556 = vmatpush.msra.mxu0 %v483
    %557 = vmatpush.msra.mxu0 %v480
    %558 = vmatpush.msra.mxu0 %v477
    %559 = vmatpush.msra.mxu0 %v474
    %560 = vmatpush.msra.mxu0 %v471
    %561 = vmatpush.msra.mxu0 %v468
    %562 = vmatpush.msra.mxu0 %v465
    %563 = vmatpush.msra.mxu0 %v462
    %564 = vmatmul.f32.gmra.mxu0 %v455
    %v565 = vpop.f32.mrf.mxu0
    %v566 = vadd.f32 0.0, %v565
    %567 = vdwg.mxu0
    %v568 = vadd.f32 %v457, %v526
    %v569 = vxor.u32 %v568, 2147483648
    %v570 = vmul.f32 %v569, 1.442695
    %v571 = vpow.pop %v570
    %v572 = vadd.f32 %v571, 1.0
    %v573 = vrcp.pop %v572
    %v574 = vmul.f32 %v572, %v573
    %v575 = vsub.f32 1.0, %v574
    %v576 = vmul.f32 %v573, %v575
    %v577 = vadd.f32 %v573, %v576
    %vm578 = vweird.f32 %v572
    %vm579 = vweird.f32 %v573
    %vm580 = vmor %vm578, %vm579
    %v581 = vsel %vm580, %v573, %v577
    %v582 = vand.u32 2147483647, %v572
    %vm583 = vcmp.eq.f32.partialorder %v582, 8.507059e+37
    %v584 = vand.u32 %v572, 2147483648
    %v585 = vor.u32 1.1754944e-38, %v584
    %v586 = vsel %vm583, %v585, %v581
    %v587 = vmul.f32 1.0, %v586
    %v588 = vadd.f32 %v458, %v546
    %v589 = vxor.u32 %v588, 2147483648
    %v590 = vmul.f32 %v589, 1.442695
    %v591 = vpow.pop %v590
    %v592 = vadd.f32 %v591, 1.0
    %v593 = vrcp.pop %v592
    %v594 = vmul.f32 %v592, %v593
    %v595 = vsub.f32 1.0, %v594
    %v596 = vmul.f32 %v593, %v595
    %v597 = vadd.f32 %v593, %v596
    %vm598 = vweird.f32 %v592
    %vm599 = vweird.f32 %v593
    %vm600 = vmor %vm598, %vm599
    %v601 = vsel %vm600, %v593, %v597
    %v602 = vand.u32 2147483647, %v592
    %vm603 = vcmp.eq.f32.partialorder %v602, 8.507059e+37
    %v604 = vand.u32 %v592, 2147483648
    %v605 = vor.u32 1.1754944e-38, %v604
    %v606 = vsel %vm603, %v605, %v601
    %v607 = vmul.f32 1.0, %v606
    %v608 = vadd.f32 %v566, %v287
    %v609 = vmul.f32 %v587, %v608
    %v610 = vadd.f32 %v459, %v609
    %v611 = vtanh.pop %v610
    %v612 = vsub.f32 1.0, %v607
    %v613 = vmul.f32 %v612, %v611
    %v614 = vmul.f32 %v607, %v455
    %v615 = vadd.f32 %v613, %v614
    %vm616 = vcmp.gt.s32.totalorder %v289, 1
    %v617 = vsel %vm616, 1, 0
    %618 = vset.pattern.permute.xlu0 0
    %619 = vperm.xlu0 %618, %v617
    %v620 = vpop.permute.xlu0 %619
    %vm621 = vcmp.eq.s32.totalorder %v620, 1
    %v622 = vsel %vm621, %v615, %v455
    %v623 = vsel %vm621, %v615, 0.0
    %s624 = scalar_lea.vmem [#allocation9], 8
    %625 = vst [vmem:[%s624] sm:$0xff] %v623
    %v626 = vld [vmem:[#allocation2 + $0x30] sm:$0xff]
    %v627 = vld [vmem:[#allocation2 + $0x38] sm:$0xff]
    %v628 = vld [vmem:[#allocation2 + $0x40] sm:$0xff]
    %v629 = vld [vmem:[#allocation8] sm:$0xff]
    %v630 = vld [vmem:[#allocation8 + $0x8] sm:$0xff]
    %v631 = vld [vmem:[#allocation8 + $0x10] sm:$0xff]
    %v632 = vld [vmem:[#allocation8 + $0x18] sm:$0xff]
    %v633 = vld [vmem:[#allocation8 + $0x20] sm:$0xff]
    %v634 = vld [vmem:[#allocation8 + $0x28] sm:$0xff]
    %v635 = vld [vmem:[#allocation8 + $0x30] sm:$0xff]
    %v636 = vld [vmem:[#allocation8 + $0x38] sm:$0xff]
    %v637 = vld [vmem:[#allocation8 + $0x40] sm:$0xff]
    %v638 = vld [vmem:[#allocation8 + $0x48] sm:$0xff]
    %v639 = vld [vmem:[#allocation8 + $0x50] sm:$0xff]
    %v640 = vld [vmem:[#allocation8 + $0x58] sm:$0xff]
    %v641 = vld [vmem:[#allocation8 + $0x60] sm:$0xff]
    %v642 = vld [vmem:[#allocation8 + $0x68] sm:$0xff]
    %v643 = vld [vmem:[#allocation8 + $0x70] sm:$0xff]
    %v644 = vld [vmem:[#allocation8 + $0x78] sm:$0xff]
    %v645 = vld [vmem:[#allocation8 + $0x80] sm:$0xff]
    %v646 = vld [vmem:[#allocation8 + $0x88] sm:$0xff]
    %v647 = vld [vmem:[#allocation8 + $0x90] sm:$0xff]
    %v648 = vld [vmem:[#allocation8 + $0x98] sm:$0xff]
    %v649 = vld [vmem:[#allocation8 + $0xa0] sm:$0xff]
    %v650 = vld [vmem:[#allocation8 + $0xa8] sm:$0xff]
    %v651 = vld [vmem:[#allocation8 + $0xb0] sm:$0xff]
    %v652 = vld [vmem:[#allocation8 + $0xb8] sm:$0xff]
    %v653 = vld [vmem:[#allocation8 + $0xc0] sm:$0xff]
    %v654 = vld [vmem:[#allocation8 + $0xc8] sm:$0xff]
    %v655 = vld [vmem:[#allocation8 + $0xd0] sm:$0xff]
    %v656 = vld [vmem:[#allocation8 + $0xd8] sm:$0xff]
    %v657 = vld [vmem:[#allocation8 + $0xe0] sm:$0xff]
    %v658 = vld [vmem:[#allocation8 + $0xe8] sm:$0xff]
    %v659 = vld [vmem:[#allocation8 + $0xf0] sm:$0xff]
    %v660 = vld [vmem:[#allocation8 + $0xf8] sm:$0xff]
    %v661 = vld [vmem:[#allocation8 + $0x100] sm:$0xff]
    %v662 = vld [vmem:[#allocation8 + $0x108] sm:$0xff]
    %v663 = vld [vmem:[#allocation8 + $0x110] sm:$0xff]
    %v664 = vld [vmem:[#allocation8 + $0x118] sm:$0xff]
    %v665 = vld [vmem:[#allocation8 + $0x120] sm:$0xff]
    %v666 = vld [vmem:[#allocation8 + $0x128] sm:$0xff]
    %v667 = vld [vmem:[#allocation8 + $0x130] sm:$0xff]
    %v668 = vld [vmem:[#allocation8 + $0x138] sm:$0xff]
    %v669 = vld [vmem:[#allocation8 + $0x140] sm:$0xff]
    %v670 = vld [vmem:[#allocation8 + $0x148] sm:$0xff]
    %v671 = vld [vmem:[#allocation8 + $0x150] sm:$0xff]
    %v672 = vld [vmem:[#allocation8 + $0x158] sm:$0xff]
    %v673 = vld [vmem:[#allocation8 + $0x160] sm:$0xff]
    %v674 = vld [vmem:[#allocation8 + $0x168] sm:$0xff]
    %v675 = vld [vmem:[#allocation8 + $0x170] sm:$0xff]
    %v676 = vld [vmem:[#allocation8 + $0x178] sm:$0xff]
    %677 = vmatpush.msra.mxu0 %v674
    %678 = vmatpush.msra.mxu0 %v671
    %679 = vmatpush.msra.mxu0 %v668
    %680 = vmatpush.msra.mxu0 %v665
    %681 = vmatpush.msra.mxu0 %v662
    %682 = vmatpush.msra.mxu0 %v659
    %683 = vmatpush.msra.mxu0 %v656
    %684 = vmatpush.msra.mxu0 %v653
    %685 = vmatpush.msra.mxu0 %v650
    %686 = vmatpush.msra.mxu0 %v647
    %687 = vmatpush.msra.mxu0 %v644
    %688 = vmatpush.msra.mxu0 %v641
    %689 = vmatpush.msra.mxu0 %v638
    %690 = vmatpush.msra.mxu0 %v635
    %691 = vmatpush.msra.mxu0 %v632
    %692 = vmatpush.msra.mxu0 %v629
    %693 = vmatmul.f32.gmra.mxu0 %v622
    %v694 = vpop.f32.mrf.mxu0
    %v695 = vadd.f32 0.0, %v694
    %696 = vdwg.mxu0
    %697 = vmatpush.msra.mxu0 %v675
    %698 = vmatpush.msra.mxu0 %v672
    %699 = vmatpush.msra.mxu0 %v669
    %700 = vmatpush.msra.mxu0 %v666
    %701 = vmatpush.msra.mxu0 %v663
    %702 = vmatpush.msra.mxu0 %v660
    %703 = vmatpush.msra.mxu0 %v657
    %704 = vmatpush.msra.mxu0 %v654
    %705 = vmatpush.msra.mxu0 %v651
    %706 = vmatpush.msra.mxu0 %v648
    %707 = vmatpush.msra.mxu0 %v645
    %708 = vmatpush.msra.mxu0 %v642
    %709 = vmatpush.msra.mxu0 %v639
    %710 = vmatpush.msra.mxu0 %v636
    %711 = vmatpush.msra.mxu0 %v633
    %712 = vmatpush.msra.mxu0 %v630
    %713 = vmatmul.f32.gmra.mxu0 %v622
    %v714 = vpop.f32.mrf.mxu0
    %v715 = vadd.f32 0.0, %v714
    %716 = vdwg.mxu0
    %717 = vmatpush.msra.mxu0 %v676
    %718 = vmatpush.msra.mxu0 %v673
    %719 = vmatpush.msra.mxu0 %v670
    %720 = vmatpush.msra.mxu0 %v667
    %721 = vmatpush.msra.mxu0 %v664
    %722 = vmatpush.msra.mxu0 %v661
    %723 = vmatpush.msra.mxu0 %v658
    %724 = vmatpush.msra.mxu0 %v655
    %725 = vmatpush.msra.mxu0 %v652
    %726 = vmatpush.msra.mxu0 %v649
    %727 = vmatpush.msra.mxu0 %v646
    %728 = vmatpush.msra.mxu0 %v643
    %729 = vmatpush.msra.mxu0 %v640
    %730 = vmatpush.msra.mxu0 %v637
    %731 = vmatpush.msra.mxu0 %v634
    %732 = vmatpush.msra.mxu0 %v631
    %733 = vmatmul.f32.gmra.mxu0 %v622
    %v734 = vpop.f32.mrf.mxu0
    %v735 = vadd.f32 0.0, %v734
    %736 = vdwg.mxu0
    %v737 = vadd.f32 %v626, %v695
    %v738 = vxor.u32 %v737, 2147483648
    %v739 = vmul.f32 %v738, 1.442695
    %v740 = vpow.pop %v739
    %v741 = vadd.f32 %v740, 1.0
    %v742 = vrcp.pop %v741
    %v743 = vmul.f32 %v741, %v742
    %v744 = vsub.f32 1.0, %v743
    %v745 = vmul.f32 %v742, %v744
    %v746 = vadd.f32 %v742, %v745
    %vm747 = vweird.f32 %v741
    %vm748 = vweird.f32 %v742
    %vm749 = vmor %vm747, %vm748
    %v750 = vsel %vm749, %v742, %v746
    %v751 = vand.u32 2147483647, %v741
    %vm752 = vcmp.eq.f32.partialorder %v751, 8.507059e+37
    %v753 = vand.u32 %v741, 2147483648
    %v754 = vor.u32 1.1754944e-38, %v753
    %v755 = vsel %vm752, %v754, %v750
    %v756 = vmul.f32 1.0, %v755
    %v757 = vadd.f32 %v627, %v715
    %v758 = vxor.u32 %v757, 2147483648
    %v759 = vmul.f32 %v758, 1.442695
    %v760 = vpow.pop %v759
    %v761 = vadd.f32 %v760, 1.0
    %v762 = vrcp.pop %v761
    %v763 = vmul.f32 %v761, %v762
    %v764 = vsub.f32 1.0, %v763
    %v765 = vmul.f32 %v762, %v764
    %v766 = vadd.f32 %v762, %v765
    %vm767 = vweird.f32 %v761
    %vm768 = vweird.f32 %v762
    %vm769 = vmor %vm767, %vm768
    %v770 = vsel %vm769, %v762, %v766
    %v771 = vand.u32 2147483647, %v761
    %vm772 = vcmp.eq.f32.partialorder %v771, 8.507059e+37
    %v773 = vand.u32 %v761, 2147483648
    %v774 = vor.u32 1.1754944e-38, %v773
    %v775 = vsel %vm772, %v774, %v770
    %v776 = vmul.f32 1.0, %v775
    %v777 = vadd.f32 %v735, %v287
    %v778 = vmul.f32 %v756, %v777
    %v779 = vadd.f32 %v628, %v778
    %v780 = vtanh.pop %v779
    %v781 = vsub.f32 1.0, %v776
    %v782 = vmul.f32 %v781, %v780
    %v783 = vmul.f32 %v776, %v622
    %v784 = vadd.f32 %v782, %v783
    %vm785 = vcmp.gt.s32.totalorder %v289, 2
    %v786 = vsel %vm785, 1, 0
    %787 = vset.pattern.permute.xlu0 0
    %788 = vperm.xlu0 %787, %v786
    %v789 = vpop.permute.xlu0 %788
    %vm790 = vcmp.eq.s32.totalorder %v789, 1
    %v791 = vsel %vm790, %v784, %v622
    %v792 = vsel %vm790, %v784, 0.0
    %s793 = scalar_lea.vmem [#allocation9], 16
    %794 = vst [vmem:[%s793] sm:$0xff] %v792
    %v795 = vld [vmem:[#allocation2 + $0x48] sm:$0xff]
    %v796 = vld [vmem:[#allocation2 + $0x50] sm:$0xff]
    %v797 = vld [vmem:[#allocation2 + $0x58] sm:$0xff]
    %v798 = vld [vmem:[#allocation8] sm:$0xff]
    %v799 = vld [vmem:[#allocation8 + $0x8] sm:$0xff]
    %v800 = vld [vmem:[#allocation8 + $0x10] sm:$0xff]
    %v801 = vld [vmem:[#allocation8 + $0x18] sm:$0xff]
    %v802 = vld [vmem:[#allocation8 + $0x20] sm:$0xff]
    %v803 = vld [vmem:[#allocation8 + $0x28] sm:$0xff]
    %v804 = vld [vmem:[#allocation8 + $0x30] sm:$0xff]
    %v805 = vld [vmem:[#allocation8 + $0x38] sm:$0xff]
    %v806 = vld [vmem:[#allocation8 + $0x40] sm:$0xff]
    %v807 = vld [vmem:[#allocation8 + $0x48] sm:$0xff]
    %v808 = vld [vmem:[#allocation8 + $0x50] sm:$0xff]
    %v809 = vld [vmem:[#allocation8 + $0x58] sm:$0xff]
    %v810 = vld [vmem:[#allocation8 + $0x60] sm:$0xff]
    %v811 = vld [vmem:[#allocation8 + $0x68] sm:$0xff]
    %v812 = vld [vmem:[#allocation8 + $0x70] sm:$0xff]
    %v813 = vld [vmem:[#allocation8 + $0x78] sm:$0xff]
    %v814 = vld [vmem:[#allocation8 + $0x80] sm:$0xff]
    %v815 = vld [vmem:[#allocation8 + $0x88] sm:$0xff]
    %v816 = vld [vmem:[#allocation8 + $0x90] sm:$0xff]
    %v817 = vld [vmem:[#allocation8 + $0x98] sm:$0xff]
    %v818 = vld [vmem:[#allocation8 + $0xa0] sm:$0xff]
    %v819 = vld [vmem:[#allocation8 + $0xa8] sm:$0xff]
    %v820 = vld [vmem:[#allocation8 + $0xb0] sm:$0xff]
    %v821 = vld [vmem:[#allocation8 + $0xb8] sm:$0xff]
    %v822 = vld [vmem:[#allocation8 + $0xc0] sm:$0xff]
    %v823 = vld [vmem:[#allocation8 + $0xc8] sm:$0xff]
    %v824 = vld [vmem:[#allocation8 + $0xd0] sm:$0xff]
    %v825 = vld [vmem:[#allocation8 + $0xd8] sm:$0xff]
    %v826 = vld [vmem:[#allocation8 + $0xe0] sm:$0xff]
    %v827 = vld [vmem:[#allocation8 + $0xe8] sm:$0xff]
    %v828 = vld [vmem:[#allocation8 + $0xf0] sm:$0xff]
    %v829 = vld [vmem:[#allocation8 + $0xf8] sm:$0xff]
    %v830 = vld [vmem:[#allocation8 + $0x100] sm:$0xff]
    %v831 = vld [vmem:[#allocation8 + $0x108] sm:$0xff]
    %v832 = vld [vmem:[#allocation8 + $0x110] sm:$0xff]
    %v833 = vld [vmem:[#allocation8 + $0x118] sm:$0xff]
    %v834 = vld [vmem:[#allocation8 + $0x120] sm:$0xff]
    %v835 = vld [vmem:[#allocation8 + $0x128] sm:$0xff]
    %v836 = vld [vmem:[#allocation8 + $0x130] sm:$0xff]
    %v837 = vld [vmem:[#allocation8 + $0x138] sm:$0xff]
    %v838 = vld [vmem:[#allocation8 + $0x140] sm:$0xff]
    %v839 = vld [vmem:[#allocation8 + $0x148] sm:$0xff]
    %v840 = vld [vmem:[#allocation8 + $0x150] sm:$0xff]
    %v841 = vld [vmem:[#allocation8 + $0x158] sm:$0xff]
    %v842 = vld [vmem:[#allocation8 + $0x160] sm:$0xff]
    %v843 = vld [vmem:[#allocation8 + $0x168] sm:$0xff]
    %v844 = vld [vmem:[#allocation8 + $0x170] sm:$0xff]
    %v845 = vld [vmem:[#allocation8 + $0x178] sm:$0xff]
    %846 = vmatpush.msra.mxu0 %v843
    %847 = vmatpush.msra.mxu0 %v840
    %848 = vmatpush.msra.mxu0 %v837
    %849 = vmatpush.msra.mxu0 %v834
    %850 = vmatpush.msra.mxu0 %v831
    %851 = vmatpush.msra.mxu0 %v828
    %852 = vmatpush.msra.mxu0 %v825
    %853 = vmatpush.msra.mxu0 %v822
    %854 = vmatpush.msra.mxu0 %v819
    %855 = vmatpush.msra.mxu0 %v816
    %856 = vmatpush.msra.mxu0 %v813
    %857 = vmatpush.msra.mxu0 %v810
    %858 = vmatpush.msra.mxu0 %v807
    %859 = vmatpush.msra.mxu0 %v804
    %860 = vmatpush.msra.mxu0 %v801
    %861 = vmatpush.msra.mxu0 %v798
    %862 = vmatmul.f32.gmra.mxu0 %v791
    %v863 = vpop.f32.mrf.mxu0
    %v864 = vadd.f32 0.0, %v863
    %865 = vdwg.mxu0
    %866 = vmatpush.msra.mxu0 %v844
    %867 = vmatpush.msra.mxu0 %v841
    %868 = vmatpush.msra.mxu0 %v838
    %869 = vmatpush.msra.mxu0 %v835
    %870 = vmatpush.msra.mxu0 %v832
    %871 = vmatpush.msra.mxu0 %v829
    %872 = vmatpush.msra.mxu0 %v826
    %873 = vmatpush.msra.mxu0 %v823
    %874 = vmatpush.msra.mxu0 %v820
    %875 = vmatpush.msra.mxu0 %v817
    %876 = vmatpush.msra.mxu0 %v814
    %877 = vmatpush.msra.mxu0 %v811
    %878 = vmatpush.msra.mxu0 %v808
    %879 = vmatpush.msra.mxu0 %v805
    %880 = vmatpush.msra.mxu0 %v802
    %881 = vmatpush.msra.mxu0 %v799
    %882 = vmatmul.f32.gmra.mxu0 %v791
    %v883 = vpop.f32.mrf.mxu0
    %v884 = vadd.f32 0.0, %v883
    %885 = vdwg.mxu0
    %886 = vmatpush.msra.mxu0 %v845
    %887 = vmatpush.msra.mxu0 %v842
    %888 = vmatpush.msra.mxu0 %v839
    %889 = vmatpush.msra.mxu0 %v836
    %890 = vmatpush.msra.mxu0 %v833
    %891 = vmatpush.msra.mxu0 %v830
    %892 = vmatpush.msra.mxu0 %v827
    %893 = vmatpush.msra.mxu0 %v824
    %894 = vmatpush.msra.mxu0 %v821
    %895 = vmatpush.msra.mxu0 %v818
    %896 = vmatpush.msra.mxu0 %v815
    %897 = vmatpush.msra.mxu0 %v812
    %898 = vmatpush.msra.mxu0 %v809
    %899 = vmatpush.msra.mxu0 %v806
    %900 = vmatpush.msra.mxu0 %v803
    %901 = vmatpush.msra.mxu0 %v800
    %902 = vmatmul.f32.gmra.mxu0 %v791
    %v903 = vpop.f32.mrf.mxu0
    %v904 = vadd.f32 0.0, %v903
    %905 = vdwg.mxu0
    %v906 = vadd.f32 %v795, %v864
    %v907 = vxor.u32 %v906, 2147483648
    %v908 = vmul.f32 %v907, 1.442695
    %v909 = vpow.pop %v908
    %v910 = vadd.f32 %v909, 1.0
    %v911 = vrcp.pop %v910
    %v912 = vmul.f32 %v910, %v911
    %v913 = vsub.f32 1.0, %v912
    %v914 = vmul.f32 %v911, %v913
    %v915 = vadd.f32 %v911, %v914
    %vm916 = vweird.f32 %v910
    %vm917 = vweird.f32 %v911
    %vm918 = vmor %vm916, %vm917
    %v919 = vsel %vm918, %v911, %v915
    %v920 = vand.u32 2147483647, %v910
    %vm921 = vcmp.eq.f32.partialorder %v920, 8.507059e+37
    %v922 = vand.u32 %v910, 2147483648
    %v923 = vor.u32 1.1754944e-38, %v922
    %v924 = vsel %vm921, %v923, %v919
    %v925 = vmul.f32 1.0, %v924
    %v926 = vadd.f32 %v796, %v884
    %v927 = vxor.u32 %v926, 2147483648
    %v928 = vmul.f32 %v927, 1.442695
    %v929 = vpow.pop %v928
    %v930 = vadd.f32 %v929, 1.0
    %v931 = vrcp.pop %v930
    %v932 = vmul.f32 %v930, %v931
    %v933 = vsub.f32 1.0, %v932
    %v934 = vmul.f32 %v931, %v933
    %v935 = vadd.f32 %v931, %v934
    %vm936 = vweird.f32 %v930
    %vm937 = vweird.f32 %v931
    %vm938 = vmor %vm936, %vm937
    %v939 = vsel %vm938, %v931, %v935
    %v940 = vand.u32 2147483647, %v930
    %vm941 = vcmp.eq.f32.partialorder %v940, 8.507059e+37
    %v942 = vand.u32 %v930, 2147483648
    %v943 = vor.u32 1.1754944e-38, %v942
    %v944 = vsel %vm941, %v943, %v939
    %v945 = vmul.f32 1.0, %v944
    %v946 = vadd.f32 %v904, %v287
    %v947 = vmul.f32 %v925, %v946
    %v948 = vadd.f32 %v797, %v947
    %v949 = vtanh.pop %v948
    %v950 = vsub.f32 1.0, %v945
    %v951 = vmul.f32 %v950, %v949
    %v952 = vmul.f32 %v945, %v791
    %v953 = vadd.f32 %v951, %v952
    %vm954 = vcmp.gt.s32.totalorder %v289, 3
    %v955 = vsel %vm954, 1, 0
    %956 = vset.pattern.permute.xlu0 0
    %957 = vperm.xlu0 %956, %v955
    %v958 = vpop.permute.xlu0 %957
    %vm959 = vcmp.eq.s32.totalorder %v958, 1
    %v960 = vsel %vm959, %v953, %v791
    %v961 = vsel %vm959, %v953, 0.0
    %s962 = scalar_lea.vmem [#allocation9], 24
    %963 = vst [vmem:[%s962] sm:$0xff] %v961
    %v964 = vld [vmem:[#allocation2 + $0x60] sm:$0xff]
    %v965 = vld [vmem:[#allocation2 + $0x68] sm:$0xff]
    %v966 = vld [vmem:[#allocation2 + $0x70] sm:$0xff]
    %v967 = vld [vmem:[#allocation8] sm:$0xff]
    %v968 = vld [vmem:[#allocation8 + $0x8] sm:$0xff]
    %v969 = vld [vmem:[#allocation8 + $0x10] sm:$0xff]
    %v970 = vld [vmem:[#allocation8 + $0x18] sm:$0xff]
    %v971 = vld [vmem:[#allocation8 + $0x20] sm:$0xff]
    %v972 = vld [vmem:[#allocation8 + $0x28] sm:$0xff]
    %v973 = vld [vmem:[#allocation8 + $0x30] sm:$0xff]
    %v974 = vld [vmem:[#allocation8 + $0x38] sm:$0xff]
    %v975 = vld [vmem:[#allocation8 + $0x40] sm:$0xff]
    %v976 = vld [vmem:[#allocation8 + $0x48] sm:$0xff]
    %v977 = vld [vmem:[#allocation8 + $0x50] sm:$0xff]
    %v978 = vld [vmem:[#allocation8 + $0x58] sm:$0xff]
    %v979 = vld [vmem:[#allocation8 + $0x60] sm:$0xff]
    %v980 = vld [vmem:[#allocation8 + $0x68] sm:$0xff]
    %v981 = vld [vmem:[#allocation8 + $0x70] sm:$0xff]
    %v982 = vld [vmem:[#allocation8 + $0x78] sm:$0xff]
    %v983 = vld [vmem:[#allocation8 + $0x80] sm:$0xff]
    %v984 = vld [vmem:[#allocation8 + $0x88] sm:$0xff]
    %v985 = vld [vmem:[#allocation8 + $0x90] sm:$0xff]
    %v986 = vld [vmem:[#allocation8 + $0x98] sm:$0xff]
    %v987 = vld [vmem:[#allocation8 + $0xa0] sm:$0xff]
    %v988 = vld [vmem:[#allocation8 + $0xa8] sm:$0xff]
    %v989 = vld [vmem:[#allocation8 + $0xb0] sm:$0xff]
    %v990 = vld [vmem:[#allocation8 + $0xb8] sm:$0xff]
    %v991 = vld [vmem:[#allocation8 + $0xc0] sm:$0xff]
    %v992 = vld [vmem:[#allocation8 + $0xc8] sm:$0xff]
    %v993 = vld [vmem:[#allocation8 + $0xd0] sm:$0xff]
    %v994 = vld [vmem:[#allocation8 + $0xd8] sm:$0xff]
    %v995 = vld [vmem:[#allocation8 + $0xe0] sm:$0xff]
    %v996 = vld [vmem:[#allocation8 + $0xe8] sm:$0xff]
    %v997 = vld [vmem:[#allocation8 + $0xf0] sm:$0xff]
    %v998 = vld [vmem:[#allocation8 + $0xf8] sm:$0xff]
    %v999 = vld [vmem:[#allocation8 + $0x100] sm:$0xff]
    %v1000 = vld [vmem:[#allocation8 + $0x108] sm:$0xff]
    %v1001 = vld [vmem:[#allocation8 + $0x110] sm:$0xff]
    %v1002 = vld [vmem:[#allocation8 + $0x118] sm:$0xff]
    %v1003 = vld [vmem:[#allocation8 + $0x120] sm:$0xff]
    %v1004 = vld [vmem:[#allocation8 + $0x128] sm:$0xff]
    %v1005 = vld [vmem:[#allocation8 + $0x130] sm:$0xff]
    %v1006 = vld [vmem:[#allocation8 + $0x138] sm:$0xff]
    %v1007 = vld [vmem:[#allocation8 + $0x140] sm:$0xff]
    %v1008 = vld [vmem:[#allocation8 + $0x148] sm:$0xff]
    %v1009 = vld [vmem:[#allocation8 + $0x150] sm:$0xff]
    %v1010 = vld [vmem:[#allocation8 + $0x158] sm:$0xff]
    %v1011 = vld [vmem:[#allocation8 + $0x160] sm:$0xff]
    %v1012 = vld [vmem:[#allocation8 + $0x168] sm:$0xff]
    %v1013 = vld [vmem:[#allocation8 + $0x170] sm:$0xff]
    %v1014 = vld [vmem:[#allocation8 + $0x178] sm:$0xff]
    %1015 = vmatpush.msra.mxu0 %v1012
    %1016 = vmatpush.msra.mxu0 %v1009
    %1017 = vmatpush.msra.mxu0 %v1006
    %1018 = vmatpush.msra.mxu0 %v1003
    %1019 = vmatpush.msra.mxu0 %v1000
    %1020 = vmatpush.msra.mxu0 %v997
    %1021 = vmatpush.msra.mxu0 %v994
    %1022 = vmatpush.msra.mxu0 %v991
    %1023 = vmatpush.msra.mxu0 %v988
    %1024 = vmatpush.msra.mxu0 %v985
    %1025 = vmatpush.msra.mxu0 %v982
    %1026 = vmatpush.msra.mxu0 %v979
    %1027 = vmatpush.msra.mxu0 %v976
    %1028 = vmatpush.msra.mxu0 %v973
    %1029 = vmatpush.msra.mxu0 %v970
    %1030 = vmatpush.msra.mxu0 %v967
    %1031 = vmatmul.f32.gmra.mxu0 %v960
    %v1032 = vpop.f32.mrf.mxu0
    %v1033 = vadd.f32 0.0, %v1032
    %1034 = vdwg.mxu0
    %1035 = vmatpush.msra.mxu0 %v1013
    %1036 = vmatpush.msra.mxu0 %v1010
    %1037 = vmatpush.msra.mxu0 %v1007
    %1038 = vmatpush.msra.mxu0 %v1004
    %1039 = vmatpush.msra.mxu0 %v1001
    %1040 = vmatpush.msra.mxu0 %v998
    %1041 = vmatpush.msra.mxu0 %v995
    %1042 = vmatpush.msra.mxu0 %v992
    %1043 = vmatpush.msra.mxu0 %v989
    %1044 = vmatpush.msra.mxu0 %v986
    %1045 = vmatpush.msra.mxu0 %v983
    %1046 = vmatpush.msra.mxu0 %v980
    %1047 = vmatpush.msra.mxu0 %v977
    %1048 = vmatpush.msra.mxu0 %v974
    %1049 = vmatpush.msra.mxu0 %v971
    %1050 = vmatpush.msra.mxu0 %v968
    %1051 = vmatmul.f32.gmra.mxu0 %v960
    %v1052 = vpop.f32.mrf.mxu0
    %v1053 = vadd.f32 0.0, %v1052
    %1054 = vdwg.mxu0
    %1055 = vmatpush.msra.mxu0 %v1014
    %1056 = vmatpush.msra.mxu0 %v1011
    %1057 = vmatpush.msra.mxu0 %v1008
    %1058 = vmatpush.msra.mxu0 %v1005
    %1059 = vmatpush.msra.mxu0 %v1002
    %1060 = vmatpush.msra.mxu0 %v999
    %1061 = vmatpush.msra.mxu0 %v996
    %1062 = vmatpush.msra.mxu0 %v993
    %1063 = vmatpush.msra.mxu0 %v990
    %1064 = vmatpush.msra.mxu0 %v987
    %1065 = vmatpush.msra.mxu0 %v984
    %1066 = vmatpush.msra.mxu0 %v981
    %1067 = vmatpush.msra.mxu0 %v978
    %1068 = vmatpush.msra.mxu0 %v975
    %1069 = vmatpush.msra.mxu0 %v972
    %1070 = vmatpush.msra.mxu0 %v969
    %1071 = vmatmul.f32.gmra.mxu0 %v960
    %v1072 = vpop.f32.mrf.mxu0
    %v1073 = vadd.f32 0.0, %v1072
    %1074 = vdwg.mxu0
    %v1075 = vadd.f32 %v964, %v1033
    %v1076 = vxor.u32 %v1075, 2147483648
    %v1077 = vmul.f32 %v1076, 1.442695
    %v1078 = vpow.pop %v1077
    %v1079 = vadd.f32 %v1078, 1.0
    %v1080 = vrcp.pop %v1079
    %v1081 = vmul.f32 %v1079, %v1080
    %v1082 = vsub.f32 1.0, %v1081
    %v1083 = vmul.f32 %v1080, %v1082
    %v1084 = vadd.f32 %v1080, %v1083
    %vm1085 = vweird.f32 %v1079
    %vm1086 = vweird.f32 %v1080
    %vm1087 = vmor %vm1085, %vm1086
    %v1088 = vsel %vm1087, %v1080, %v1084
    %v1089 = vand.u32 2147483647, %v1079
    %vm1090 = vcmp.eq.f32.partialorder %v1089, 8.507059e+37
    %v1091 = vand.u32 %v1079, 2147483648
    %v1092 = vor.u32 1.1754944e-38, %v1091
    %v1093 = vsel %vm1090, %v1092, %v1088
    %v1094 = vmul.f32 1.0, %v1093
    %v1095 = vadd.f32 %v965, %v1053
    %v1096 = vxor.u32 %v1095, 2147483648
    %v1097 = vmul.f32 %v1096, 1.442695
    %v1098 = vpow.pop %v1097
    %v1099 = vadd.f32 %v1098, 1.0
    %v1100 = vrcp.pop %v1099
    %v1101 = vmul.f32 %v1099, %v1100
    %v1102 = vsub.f32 1.0, %v1101
    %v1103 = vmul.f32 %v1100, %v1102
    %v1104 = vadd.f32 %v1100, %v1103
    %vm1105 = vweird.f32 %v1099
    %vm1106 = vweird.f32 %v1100
    %vm1107 = vmor %vm1105, %vm1106
    %v1108 = vsel %vm1107, %v1100, %v1104
    %v1109 = vand.u32 2147483647, %v1099
    %vm1110 = vcmp.eq.f32.partialorder %v1109, 8.507059e+37
    %v1111 = vand.u32 %v1099, 2147483648
    %v1112 = vor.u32 1.1754944e-38, %v1111
    %v1113 = vsel %vm1110, %v1112, %v1108
    %v1114 = vmul.f32 1.0, %v1113
    %v1115 = vadd.f32 %v1073, %v287
    %v1116 = vmul.f32 %v1094, %v1115
    %v1117 = vadd.f32 %v966, %v1116
    %v1118 = vtanh.pop %v1117
    %v1119 = vsub.f32 1.0, %v1114
    %v1120 = vmul.f32 %v1119, %v1118
    %v1121 = vmul.f32 %v1114, %v960
    %v1122 = vadd.f32 %v1120, %v1121
    %vm1123 = vcmp.gt.s32.totalorder %v289, 4
    %v1124 = vsel %vm1123, 1, 0
    %1125 = vset.pattern.permute.xlu0 0
    %1126 = vperm.xlu0 %1125, %v1124
    %v1127 = vpop.permute.xlu0 %1126
    %vm1128 = vcmp.eq.s32.totalorder %v1127, 1
    %v1129 = vsel %vm1128, %v1122, %v960
    %v1130 = vsel %vm1128, %v1122, 0.0
    %s1131 = scalar_lea.vmem [#allocation9], 32
    %1132 = vst [vmem:[%s1131] sm:$0xff] %v1130
    %v1133 = vld [vmem:[#allocation2 + $0x78] sm:$0xff]
    %v1134 = vld [vmem:[#allocation2 + $0x80] sm:$0xff]
    %v1135 = vld [vmem:[#allocation2 + $0x88] sm:$0xff]
    %v1136 = vld [vmem:[#allocation8] sm:$0xff]
    %v1137 = vld [vmem:[#allocation8 + $0x8] sm:$0xff]
    %v1138 = vld [vmem:[#allocation8 + $0x10] sm:$0xff]
    %v1139 = vld [vmem:[#allocation8 + $0x18] sm:$0xff]
    %v1140 = vld [vmem:[#allocation8 + $0x20] sm:$0xff]
    %v1141 = vld [vmem:[#allocation8 + $0x28] sm:$0xff]
    %v1142 = vld [vmem:[#allocation8 + $0x30] sm:$0xff]
    %v1143 = vld [vmem:[#allocation8 + $0x38] sm:$0xff]
    %v1144 = vld [vmem:[#allocation8 + $0x40] sm:$0xff]
    %v1145 = vld [vmem:[#allocation8 + $0x48] sm:$0xff]
    %v1146 = vld [vmem:[#allocation8 + $0x50] sm:$0xff]
    %v1147 = vld [vmem:[#allocation8 + $0x58] sm:$0xff]
    %v1148 = vld [vmem:[#allocation8 + $0x60] sm:$0xff]
    %v1149 = vld [vmem:[#allocation8 + $0x68] sm:$0xff]
    %v1150 = vld [vmem:[#allocation8 + $0x70] sm:$0xff]
    %v1151 = vld [vmem:[#allocation8 + $0x78] sm:$0xff]
    %v1152 = vld [vmem:[#allocation8 + $0x80] sm:$0xff]
    %v1153 = vld [vmem:[#allocation8 + $0x88] sm:$0xff]
    %v1154 = vld [vmem:[#allocation8 + $0x90] sm:$0xff]
    %v1155 = vld [vmem:[#allocation8 + $0x98] sm:$0xff]
    %v1156 = vld [vmem:[#allocation8 + $0xa0] sm:$0xff]
    %v1157 = vld [vmem:[#allocation8 + $0xa8] sm:$0xff]
    %v1158 = vld [vmem:[#allocation8 + $0xb0] sm:$0xff]
    %v1159 = vld [vmem:[#allocation8 + $0xb8] sm:$0xff]
    %v1160 = vld [vmem:[#allocation8 + $0xc0] sm:$0xff]
    %v1161 = vld [vmem:[#allocation8 + $0xc8] sm:$0xff]
    %v1162 = vld [vmem:[#allocation8 + $0xd0] sm:$0xff]
    %v1163 = vld [vmem:[#allocation8 + $0xd8] sm:$0xff]
    %v1164 = vld [vmem:[#allocation8 + $0xe0] sm:$0xff]
    %v1165 = vld [vmem:[#allocation8 + $0xe8] sm:$0xff]
    %v1166 = vld [vmem:[#allocation8 + $0xf0] sm:$0xff]
    %v1167 = vld [vmem:[#allocation8 + $0xf8] sm:$0xff]
    %v1168 = vld [vmem:[#allocation8 + $0x100] sm:$0xff]
    %v1169 = vld [vmem:[#allocation8 + $0x108] sm:$0xff]
    %v1170 = vld [vmem:[#allocation8 + $0x110] sm:$0xff]
    %v1171 = vld [vmem:[#allocation8 + $0x118] sm:$0xff]
    %v1172 = vld [vmem:[#allocation8 + $0x120] sm:$0xff]
    %v1173 = vld [vmem:[#allocation8 + $0x128] sm:$0xff]
    %v1174 = vld [vmem:[#allocation8 + $0x130] sm:$0xff]
    %v1175 = vld [vmem:[#allocation8 + $0x138] sm:$0xff]
    %v1176 = vld [vmem:[#allocation8 + $0x140] sm:$0xff]
    %v1177 = vld [vmem:[#allocation8 + $0x148] sm:$0xff]
    %v1178 = vld [vmem:[#allocation8 + $0x150] sm:$0xff]
    %v1179 = vld [vmem:[#allocation8 + $0x158] sm:$0xff]
    %v1180 = vld [vmem:[#allocation8 + $0x160] sm:$0xff]
    %v1181 = vld [vmem:[#allocation8 + $0x168] sm:$0xff]
    %v1182 = vld [vmem:[#allocation8 + $0x170] sm:$0xff]
    %v1183 = vld [vmem:[#allocation8 + $0x178] sm:$0xff]
    %1184 = vmatpush.msra.mxu0 %v1181
    %1185 = vmatpush.msra.mxu0 %v1178
    %1186 = vmatpush.msra.mxu0 %v1175
    %1187 = vmatpush.msra.mxu0 %v1172
    %1188 = vmatpush.msra.mxu0 %v1169
    %1189 = vmatpush.msra.mxu0 %v1166
    %1190 = vmatpush.msra.mxu0 %v1163
    %1191 = vmatpush.msra.mxu0 %v1160
    %1192 = vmatpush.msra.mxu0 %v1157
    %1193 = vmatpush.msra.mxu0 %v1154
    %1194 = vmatpush.msra.mxu0 %v1151
    %1195 = vmatpush.msra.mxu0 %v1148
    %1196 = vmatpush.msra.mxu0 %v1145
    %1197 = vmatpush.msra.mxu0 %v1142
    %1198 = vmatpush.msra.mxu0 %v1139
    %1199 = vmatpush.msra.mxu0 %v1136
    %1200 = vmatmul.f32.gmra.mxu0 %v1129
    %v1201 = vpop.f32.mrf.mxu0
    %v1202 = vadd.f32 0.0, %v1201
    %1203 = vdwg.mxu0
    %1204 = vmatpush.msra.mxu0 %v1182
    %1205 = vmatpush.msra.mxu0 %v1179
    %1206 = vmatpush.msra.mxu0 %v1176
    %1207 = vmatpush.msra.mxu0 %v1173
    %1208 = vmatpush.msra.mxu0 %v1170
    %1209 = vmatpush.msra.mxu0 %v1167
    %1210 = vmatpush.msra.mxu0 %v1164
    %1211 = vmatpush.msra.mxu0 %v1161
    %1212 = vmatpush.msra.mxu0 %v1158
    %1213 = vmatpush.msra.mxu0 %v1155
    %1214 = vmatpush.msra.mxu0 %v1152
    %1215 = vmatpush.msra.mxu0 %v1149
    %1216 = vmatpush.msra.mxu0 %v1146
    %1217 = vmatpush.msra.mxu0 %v1143
    %1218 = vmatpush.msra.mxu0 %v1140
    %1219 = vmatpush.msra.mxu0 %v1137
    %1220 = vmatmul.f32.gmra.mxu0 %v1129
    %v1221 = vpop.f32.mrf.mxu0
    %v1222 = vadd.f32 0.0, %v1221
    %1223 = vdwg.mxu0
    %1224 = vmatpush.msra.mxu0 %v1183
    %1225 = vmatpush.msra.mxu0 %v1180
    %1226 = vmatpush.msra.mxu0 %v1177
    %1227 = vmatpush.msra.mxu0 %v1174
    %1228 = vmatpush.msra.mxu0 %v1171
    %1229 = vmatpush.msra.mxu0 %v1168
    %1230 = vmatpush.msra.mxu0 %v1165
    %1231 = vmatpush.msra.mxu0 %v1162
    %1232 = vmatpush.msra.mxu0 %v1159
    %1233 = vmatpush.msra.mxu0 %v1156
    %1234 = vmatpush.msra.mxu0 %v1153
    %1235 = vmatpush.msra.mxu0 %v1150
    %1236 = vmatpush.msra.mxu0 %v1147
    %1237 = vmatpush.msra.mxu0 %v1144
    %1238 = vmatpush.msra.mxu0 %v1141
    %1239 = vmatpush.msra.mxu0 %v1138
    %1240 = vmatmul.f32.gmra.mxu0 %v1129
    %v1241 = vpop.f32.mrf.mxu0
    %v1242 = vadd.f32 0.0, %v1241
    %1243 = vdwg.mxu0
    %v1244 = vadd.f32 %v1133, %v1202
    %v1245 = vxor.u32 %v1244, 2147483648
    %v1246 = vmul.f32 %v1245, 1.442695
    %v1247 = vpow.pop %v1246
    %v1248 = vadd.f32 %v1247, 1.0
    %v1249 = vrcp.pop %v1248
    %v1250 = vmul.f32 %v1248, %v1249
    %v1251 = vsub.f32 1.0, %v1250
    %v1252 = vmul.f32 %v1249, %v1251
    %v1253 = vadd.f32 %v1249, %v1252
    %vm1254 = vweird.f32 %v1248
    %vm1255 = vweird.f32 %v1249
    %vm1256 = vmor %vm1254, %vm1255
    %v1257 = vsel %vm1256, %v1249, %v1253
    %v1258 = vand.u32 2147483647, %v1248
    %vm1259 = vcmp.eq.f32.partialorder %v1258, 8.507059e+37
    %v1260 = vand.u32 %v1248, 2147483648
    %v1261 = vor.u32 1.1754944e-38, %v1260
    %v1262 = vsel %vm1259, %v1261, %v1257
    %v1263 = vmul.f32 1.0, %v1262
    %v1264 = vadd.f32 %v1134, %v1222
    %v1265 = vxor.u32 %v1264, 2147483648
    %v1266 = vmul.f32 %v1265, 1.442695
    %v1267 = vpow.pop %v1266
    %v1268 = vadd.f32 %v1267, 1.0
    %v1269 = vrcp.pop %v1268
    %v1270 = vmul.f32 %v1268, %v1269
    %v1271 = vsub.f32 1.0, %v1270
    %v1272 = vmul.f32 %v1269, %v1271
    %v1273 = vadd.f32 %v1269, %v1272
    %vm1274 = vweird.f32 %v1268
    %vm1275 = vweird.f32 %v1269
    %vm1276 = vmor %vm1274, %vm1275
    %v1277 = vsel %vm1276, %v1269, %v1273
    %v1278 = vand.u32 2147483647, %v1268
    %vm1279 = vcmp.eq.f32.partialorder %v1278, 8.507059e+37
    %v1280 = vand.u32 %v1268, 2147483648
    %v1281 = vor.u32 1.1754944e-38, %v1280
    %v1282 = vsel %vm1279, %v1281, %v1277
    %v1283 = vmul.f32 1.0, %v1282
    %v1284 = vadd.f32 %v1242, %v287
    %v1285 = vmul.f32 %v1263, %v1284
    %v1286 = vadd.f32 %v1135, %v1285
    %v1287 = vtanh.pop %v1286
    %v1288 = vsub.f32 1.0, %v1283
    %v1289 = vmul.f32 %v1288, %v1287
    %v1290 = vmul.f32 %v1283, %v1129
    %v1291 = vadd.f32 %v1289, %v1290
    %vm1292 = vcmp.gt.s32.totalorder %v289, 5
    %v1293 = vsel %vm1292, 1, 0
    %1294 = vset.pattern.permute.xlu0 0
    %1295 = vperm.xlu0 %1294, %v1293
    %v1296 = vpop.permute.xlu0 %1295
    %vm1297 = vcmp.eq.s32.totalorder %v1296, 1
    %v1298 = vsel %vm1297, %v1291, %v1129
    %v1299 = vsel %vm1297, %v1291, 0.0
    %s1300 = scalar_lea.vmem [#allocation9], 40
    %1301 = vst [vmem:[%s1300] sm:$0xff] %v1299
    %v1302 = vld [vmem:[#allocation2 + $0x90] sm:$0xff]
    %v1303 = vld [vmem:[#allocation2 + $0x98] sm:$0xff]
    %v1304 = vld [vmem:[#allocation2 + $0xa0] sm:$0xff]
    %v1305 = vld [vmem:[#allocation8] sm:$0xff]
    %v1306 = vld [vmem:[#allocation8 + $0x8] sm:$0xff]
    %v1307 = vld [vmem:[#allocation8 + $0x10] sm:$0xff]
    %v1308 = vld [vmem:[#allocation8 + $0x18] sm:$0xff]
    %v1309 = vld [vmem:[#allocation8 + $0x20] sm:$0xff]
    %v1310 = vld [vmem:[#allocation8 + $0x28] sm:$0xff]
    %v1311 = vld [vmem:[#allocation8 + $0x30] sm:$0xff]
    %v1312 = vld [vmem:[#allocation8 + $0x38] sm:$0xff]
    %v1313 = vld [vmem:[#allocation8 + $0x40] sm:$0xff]
    %v1314 = vld [vmem:[#allocation8 + $0x48] sm:$0xff]
    %v1315 = vld [vmem:[#allocation8 + $0x50] sm:$0xff]
    %v1316 = vld [vmem:[#allocation8 + $0x58] sm:$0xff]
    %v1317 = vld [vmem:[#allocation8 + $0x60] sm:$0xff]
    %v1318 = vld [vmem:[#allocation8 + $0x68] sm:$0xff]
    %v1319 = vld [vmem:[#allocation8 + $0x70] sm:$0xff]
    %v1320 = vld [vmem:[#allocation8 + $0x78] sm:$0xff]
    %v1321 = vld [vmem:[#allocation8 + $0x80] sm:$0xff]
    %v1322 = vld [vmem:[#allocation8 + $0x88] sm:$0xff]
    %v1323 = vld [vmem:[#allocation8 + $0x90] sm:$0xff]
    %v1324 = vld [vmem:[#allocation8 + $0x98] sm:$0xff]
    %v1325 = vld [vmem:[#allocation8 + $0xa0] sm:$0xff]
    %v1326 = vld [vmem:[#allocation8 + $0xa8] sm:$0xff]
    %v1327 = vld [vmem:[#allocation8 + $0xb0] sm:$0xff]
    %v1328 = vld [vmem:[#allocation8 + $0xb8] sm:$0xff]
    %v1329 = vld [vmem:[#allocation8 + $0xc0] sm:$0xff]
    %v1330 = vld [vmem:[#allocation8 + $0xc8] sm:$0xff]
    %v1331 = vld [vmem:[#allocation8 + $0xd0] sm:$0xff]
    %v1332 = vld [vmem:[#allocation8 + $0xd8] sm:$0xff]
    %v1333 = vld [vmem:[#allocation8 + $0xe0] sm:$0xff]
    %v1334 = vld [vmem:[#allocation8 + $0xe8] sm:$0xff]
    %v1335 = vld [vmem:[#allocation8 + $0xf0] sm:$0xff]
    %v1336 = vld [vmem:[#allocation8 + $0xf8] sm:$0xff]
    %v1337 = vld [vmem:[#allocation8 + $0x100] sm:$0xff]
    %v1338 = vld [vmem:[#allocation8 + $0x108] sm:$0xff]
    %v1339 = vld [vmem:[#allocation8 + $0x110] sm:$0xff]
    %v1340 = vld [vmem:[#allocation8 + $0x118] sm:$0xff]
    %v1341 = vld [vmem:[#allocation8 + $0x120] sm:$0xff]
    %v1342 = vld [vmem:[#allocation8 + $0x128] sm:$0xff]
    %v1343 = vld [vmem:[#allocation8 + $0x130] sm:$0xff]
    %v1344 = vld [vmem:[#allocation8 + $0x138] sm:$0xff]
    %v1345 = vld [vmem:[#allocation8 + $0x140] sm:$0xff]
    %v1346 = vld [vmem:[#allocation8 + $0x148] sm:$0xff]
    %v1347 = vld [vmem:[#allocation8 + $0x150] sm:$0xff]
    %v1348 = vld [vmem:[#allocation8 + $0x158] sm:$0xff]
    %v1349 = vld [vmem:[#allocation8 + $0x160] sm:$0xff]
    %v1350 = vld [vmem:[#allocation8 + $0x168] sm:$0xff]
    %v1351 = vld [vmem:[#allocation8 + $0x170] sm:$0xff]
    %v1352 = vld [vmem:[#allocation8 + $0x178] sm:$0xff]
    %1353 = vmatpush.msra.mxu0 %v1350
    %1354 = vmatpush.msra.mxu0 %v1347
    %1355 = vmatpush.msra.mxu0 %v1344
    %1356 = vmatpush.msra.mxu0 %v1341
    %1357 = vmatpush.msra.mxu0 %v1338
    %1358 = vmatpush.msra.mxu0 %v1335
    %1359 = vmatpush.msra.mxu0 %v1332
    %1360 = vmatpush.msra.mxu0 %v1329
    %1361 = vmatpush.msra.mxu0 %v1326
    %1362 = vmatpush.msra.mxu0 %v1323
    %1363 = vmatpush.msra.mxu0 %v1320
    %1364 = vmatpush.msra.mxu0 %v1317
    %1365 = vmatpush.msra.mxu0 %v1314
    %1366 = vmatpush.msra.mxu0 %v1311
    %1367 = vmatpush.msra.mxu0 %v1308
    %1368 = vmatpush.msra.mxu0 %v1305
    %1369 = vmatmul.f32.gmra.mxu0 %v1298
    %v1370 = vpop.f32.mrf.mxu0
    %v1371 = vadd.f32 0.0, %v1370
    %1372 = vdwg.mxu0
    %1373 = vmatpush.msra.mxu0 %v1351
    %1374 = vmatpush.msra.mxu0 %v1348
    %1375 = vmatpush.msra.mxu0 %v1345
    %1376 = vmatpush.msra.mxu0 %v1342
    %1377 = vmatpush.msra.mxu0 %v1339
    %1378 = vmatpush.msra.mxu0 %v1336
    %1379 = vmatpush.msra.mxu0 %v1333
    %1380 = vmatpush.msra.mxu0 %v1330
    %1381 = vmatpush.msra.mxu0 %v1327
    %1382 = vmatpush.msra.mxu0 %v1324
    %1383 = vmatpush.msra.mxu0 %v1321
    %1384 = vmatpush.msra.mxu0 %v1318
    %1385 = vmatpush.msra.mxu0 %v1315
    %1386 = vmatpush.msra.mxu0 %v1312
    %1387 = vmatpush.msra.mxu0 %v1309
    %1388 = vmatpush.msra.mxu0 %v1306
    %1389 = vmatmul.f32.gmra.mxu0 %v1298
    %v1390 = vpop.f32.mrf.mxu0
    %v1391 = vadd.f32 0.0, %v1390
    %1392 = vdwg.mxu0
    %1393 = vmatpush.msra.mxu0 %v1352
    %1394 = vmatpush.msra.mxu0 %v1349
    %1395 = vmatpush.msra.mxu0 %v1346
    %1396 = vmatpush.msra.mxu0 %v1343
    %1397 = vmatpush.msra.mxu0 %v1340
    %1398 = vmatpush.msra.mxu0 %v1337
    %1399 = vmatpush.msra.mxu0 %v1334
    %1400 = vmatpush.msra.mxu0 %v1331
    %1401 = vmatpush.msra.mxu0 %v1328
    %1402 = vmatpush.msra.mxu0 %v1325
    %1403 = vmatpush.msra.mxu0 %v1322
    %1404 = vmatpush.msra.mxu0 %v1319
    %1405 = vmatpush.msra.mxu0 %v1316
    %1406 = vmatpush.msra.mxu0 %v1313
    %1407 = vmatpush.msra.mxu0 %v1310
    %1408 = vmatpush.msra.mxu0 %v1307
    %1409 = vmatmul.f32.gmra.mxu0 %v1298
    %v1410 = vpop.f32.mrf.mxu0
    %v1411 = vadd.f32 0.0, %v1410
    %1412 = vdwg.mxu0
    %v1413 = vadd.f32 %v1302, %v1371
    %v1414 = vxor.u32 %v1413, 2147483648
    %v1415 = vmul.f32 %v1414, 1.442695
    %v1416 = vpow.pop %v1415
    %v1417 = vadd.f32 %v1416, 1.0
    %v1418 = vrcp.pop %v1417
    %v1419 = vmul.f32 %v1417, %v1418
    %v1420 = vsub.f32 1.0, %v1419
    %v1421 = vmul.f32 %v1418, %v1420
    %v1422 = vadd.f32 %v1418, %v1421
    %vm1423 = vweird.f32 %v1417
    %vm1424 = vweird.f32 %v1418
    %vm1425 = vmor %vm1423, %vm1424
    %v1426 = vsel %vm1425, %v1418, %v1422
    %v1427 = vand.u32 2147483647, %v1417
    %vm1428 = vcmp.eq.f32.partialorder %v1427, 8.507059e+37
    %v1429 = vand.u32 %v1417, 2147483648
    %v1430 = vor.u32 1.1754944e-38, %v1429
    %v1431 = vsel %vm1428, %v1430, %v1426
    %v1432 = vmul.f32 1.0, %v1431
    %v1433 = vadd.f32 %v1303, %v1391
    %v1434 = vxor.u32 %v1433, 2147483648
    %v1435 = vmul.f32 %v1434, 1.442695
    %v1436 = vpow.pop %v1435
    %v1437 = vadd.f32 %v1436, 1.0
    %v1438 = vrcp.pop %v1437
    %v1439 = vmul.f32 %v1437, %v1438
    %v1440 = vsub.f32 1.0, %v1439
    %v1441 = vmul.f32 %v1438, %v1440
    %v1442 = vadd.f32 %v1438, %v1441
    %vm1443 = vweird.f32 %v1437
    %vm1444 = vweird.f32 %v1438
    %vm1445 = vmor %vm1443, %vm1444
    %v1446 = vsel %vm1445, %v1438, %v1442
    %v1447 = vand.u32 2147483647, %v1437
    %vm1448 = vcmp.eq.f32.partialorder %v1447, 8.507059e+37
    %v1449 = vand.u32 %v1437, 2147483648
    %v1450 = vor.u32 1.1754944e-38, %v1449
    %v1451 = vsel %vm1448, %v1450, %v1446
    %v1452 = vmul.f32 1.0, %v1451
    %v1453 = vadd.f32 %v1411, %v287
    %v1454 = vmul.f32 %v1432, %v1453
    %v1455 = vadd.f32 %v1304, %v1454
    %v1456 = vtanh.pop %v1455
    %v1457 = vsub.f32 1.0, %v1452
    %v1458 = vmul.f32 %v1457, %v1456
    %v1459 = vmul.f32 %v1452, %v1298
    %v1460 = vadd.f32 %v1458, %v1459
    %vm1461 = vcmp.gt.s32.totalorder %v289, 6
    %v1462 = vsel %vm1461, 1, 0
    %1463 = vset.pattern.permute.xlu0 0
    %1464 = vperm.xlu0 %1463, %v1462
    %v1465 = vpop.permute.xlu0 %1464
    %vm1466 = vcmp.eq.s32.totalorder %v1465, 1
    %v1467 = vsel %vm1466, %v1460, %v1298
    %v1468 = vsel %vm1466, %v1460, 0.0
    %s1469 = scalar_lea.vmem [#allocation9], 48
    %1470 = vst [vmem:[%s1469] sm:$0xff] %v1468
    %v1471 = vld [vmem:[#allocation2 + $0xa8] sm:$0xff]
    %v1472 = vld [vmem:[#allocation2 + $0xb0] sm:$0xff]
    %v1473 = vld [vmem:[#allocation2 + $0xb8] sm:$0xff]
    %v1474 = vld [vmem:[#allocation8] sm:$0xff]
    %v1475 = vld [vmem:[#allocation8 + $0x8] sm:$0xff]
    %v1476 = vld [vmem:[#allocation8 + $0x10] sm:$0xff]
    %v1477 = vld [vmem:[#allocation8 + $0x18] sm:$0xff]
    %v1478 = vld [vmem:[#allocation8 + $0x20] sm:$0xff]
    %v1479 = vld [vmem:[#allocation8 + $0x28] sm:$0xff]
    %v1480 = vld [vmem:[#allocation8 + $0x30] sm:$0xff]
    %v1481 = vld [vmem:[#allocation8 + $0x38] sm:$0xff]
    %v1482 = vld [vmem:[#allocation8 + $0x40] sm:$0xff]
    %v1483 = vld [vmem:[#allocation8 + $0x48] sm:$0xff]
    %v1484 = vld [vmem:[#allocation8 + $0x50] sm:$0xff]
    %v1485 = vld [vmem:[#allocation8 + $0x58] sm:$0xff]
    %v1486 = vld [vmem:[#allocation8 + $0x60] sm:$0xff]
    %v1487 = vld [vmem:[#allocation8 + $0x68] sm:$0xff]
    %v1488 = vld [vmem:[#allocation8 + $0x70] sm:$0xff]
    %v1489 = vld [vmem:[#allocation8 + $0x78] sm:$0xff]
    %v1490 = vld [vmem:[#allocation8 + $0x80] sm:$0xff]
    %v1491 = vld [vmem:[#allocation8 + $0x88] sm:$0xff]
    %v1492 = vld [vmem:[#allocation8 + $0x90] sm:$0xff]
    %v1493 = vld [vmem:[#allocation8 + $0x98] sm:$0xff]
    %v1494 = vld [vmem:[#allocation8 + $0xa0] sm:$0xff]
    %v1495 = vld [vmem:[#allocation8 + $0xa8] sm:$0xff]
    %v1496 = vld [vmem:[#allocation8 + $0xb0] sm:$0xff]
    %v1497 = vld [vmem:[#allocation8 + $0xb8] sm:$0xff]
    %v1498 = vld [vmem:[#allocation8 + $0xc0] sm:$0xff]
    %v1499 = vld [vmem:[#allocation8 + $0xc8] sm:$0xff]
    %v1500 = vld [vmem:[#allocation8 + $0xd0] sm:$0xff]
    %v1501 = vld [vmem:[#allocation8 + $0xd8] sm:$0xff]
    %v1502 = vld [vmem:[#allocation8 + $0xe0] sm:$0xff]
    %v1503 = vld [vmem:[#allocation8 + $0xe8] sm:$0xff]
    %v1504 = vld [vmem:[#allocation8 + $0xf0] sm:$0xff]
    %v1505 = vld [vmem:[#allocation8 + $0xf8] sm:$0xff]
    %v1506 = vld [vmem:[#allocation8 + $0x100] sm:$0xff]
    %v1507 = vld [vmem:[#allocation8 + $0x108] sm:$0xff]
    %v1508 = vld [vmem:[#allocation8 + $0x110] sm:$0xff]
    %v1509 = vld [vmem:[#allocation8 + $0x118] sm:$0xff]
    %v1510 = vld [vmem:[#allocation8 + $0x120] sm:$0xff]
    %v1511 = vld [vmem:[#allocation8 + $0x128] sm:$0xff]
    %v1512 = vld [vmem:[#allocation8 + $0x130] sm:$0xff]
    %v1513 = vld [vmem:[#allocation8 + $0x138] sm:$0xff]
    %v1514 = vld [vmem:[#allocation8 + $0x140] sm:$0xff]
    %v1515 = vld [vmem:[#allocation8 + $0x148] sm:$0xff]
    %v1516 = vld [vmem:[#allocation8 + $0x150] sm:$0xff]
    %v1517 = vld [vmem:[#allocation8 + $0x158] sm:$0xff]
    %v1518 = vld [vmem:[#allocation8 + $0x160] sm:$0xff]
    %v1519 = vld [vmem:[#allocation8 + $0x168] sm:$0xff]
    %v1520 = vld [vmem:[#allocation8 + $0x170] sm:$0xff]
    %v1521 = vld [vmem:[#allocation8 + $0x178] sm:$0xff]
    %1522 = vmatpush.msra.mxu0 %v1519
    %1523 = vmatpush.msra.mxu0 %v1516
    %1524 = vmatpush.msra.mxu0 %v1513
    %1525 = vmatpush.msra.mxu0 %v1510
    %1526 = vmatpush.msra.mxu0 %v1507
    %1527 = vmatpush.msra.mxu0 %v1504
    %1528 = vmatpush.msra.mxu0 %v1501
    %1529 = vmatpush.msra.mxu0 %v1498
    %1530 = vmatpush.msra.mxu0 %v1495
    %1531 = vmatpush.msra.mxu0 %v1492
    %1532 = vmatpush.msra.mxu0 %v1489
    %1533 = vmatpush.msra.mxu0 %v1486
    %1534 = vmatpush.msra.mxu0 %v1483
    %1535 = vmatpush.msra.mxu0 %v1480
    %1536 = vmatpush.msra.mxu0 %v1477
    %1537 = vmatpush.msra.mxu0 %v1474
    %1538 = vmatmul.f32.gmra.mxu0 %v1467
    %v1539 = vpop.f32.mrf.mxu0
    %v1540 = vadd.f32 0.0, %v1539
    %1541 = vdwg.mxu0
    %1542 = vmatpush.msra.mxu0 %v1520
    %1543 = vmatpush.msra.mxu0 %v1517
    %1544 = vmatpush.msra.mxu0 %v1514
    %1545 = vmatpush.msra.mxu0 %v1511
    %1546 = vmatpush.msra.mxu0 %v1508
    %1547 = vmatpush.msra.mxu0 %v1505
    %1548 = vmatpush.msra.mxu0 %v1502
    %1549 = vmatpush.msra.mxu0 %v1499
    %1550 = vmatpush.msra.mxu0 %v1496
    %1551 = vmatpush.msra.mxu0 %v1493
    %1552 = vmatpush.msra.mxu0 %v1490
    %1553 = vmatpush.msra.mxu0 %v1487
    %1554 = vmatpush.msra.mxu0 %v1484
    %1555 = vmatpush.msra.mxu0 %v1481
    %1556 = vmatpush.msra.mxu0 %v1478
    %1557 = vmatpush.msra.mxu0 %v1475
    %1558 = vmatmul.f32.gmra.mxu0 %v1467
    %v1559 = vpop.f32.mrf.mxu0
    %v1560 = vadd.f32 0.0, %v1559
    %1561 = vdwg.mxu0
    %1562 = vmatpush.msra.mxu0 %v1521
    %1563 = vmatpush.msra.mxu0 %v1518
    %1564 = vmatpush.msra.mxu0 %v1515
    %1565 = vmatpush.msra.mxu0 %v1512
    %1566 = vmatpush.msra.mxu0 %v1509
    %1567 = vmatpush.msra.mxu0 %v1506
    %1568 = vmatpush.msra.mxu0 %v1503
    %1569 = vmatpush.msra.mxu0 %v1500
    %1570 = vmatpush.msra.mxu0 %v1497
    %1571 = vmatpush.msra.mxu0 %v1494
    %1572 = vmatpush.msra.mxu0 %v1491
    %1573 = vmatpush.msra.mxu0 %v1488
    %1574 = vmatpush.msra.mxu0 %v1485
    %1575 = vmatpush.msra.mxu0 %v1482
    %1576 = vmatpush.msra.mxu0 %v1479
    %1577 = vmatpush.msra.mxu0 %v1476
    %1578 = vmatmul.f32.gmra.mxu0 %v1467
    %v1579 = vpop.f32.mrf.mxu0
    %v1580 = vadd.f32 0.0, %v1579
    %1581 = vdwg.mxu0
    %v1582 = vadd.f32 %v1471, %v1540
    %v1583 = vxor.u32 %v1582, 2147483648
    %v1584 = vmul.f32 %v1583, 1.442695
    %v1585 = vpow.pop %v1584
    %v1586 = vadd.f32 %v1585, 1.0
    %v1587 = vrcp.pop %v1586
    %v1588 = vmul.f32 %v1586, %v1587
    %v1589 = vsub.f32 1.0, %v1588
    %v1590 = vmul.f32 %v1587, %v1589
    %v1591 = vadd.f32 %v1587, %v1590
    %vm1592 = vweird.f32 %v1586
    %vm1593 = vweird.f32 %v1587
    %vm1594 = vmor %vm1592, %vm1593
    %v1595 = vsel %vm1594, %v1587, %v1591
    %v1596 = vand.u32 2147483647, %v1586
    %vm1597 = vcmp.eq.f32.partialorder %v1596, 8.507059e+37
    %v1598 = vand.u32 %v1586, 2147483648
    %v1599 = vor.u32 1.1754944e-38, %v1598
    %v1600 = vsel %vm1597, %v1599, %v1595
    %v1601 = vmul.f32 1.0, %v1600
    %v1602 = vadd.f32 %v1472, %v1560
    %v1603 = vxor.u32 %v1602, 2147483648
    %v1604 = vmul.f32 %v1603, 1.442695
    %v1605 = vpow.pop %v1604
    %v1606 = vadd.f32 %v1605, 1.0
    %v1607 = vrcp.pop %v1606
    %v1608 = vmul.f32 %v1606, %v1607
    %v1609 = vsub.f32 1.0, %v1608
    %v1610 = vmul.f32 %v1607, %v1609
    %v1611 = vadd.f32 %v1607, %v1610
    %vm1612 = vweird.f32 %v1606
    %vm1613 = vweird.f32 %v1607
    %vm1614 = vmor %vm1612, %vm1613
    %v1615 = vsel %vm1614, %v1607, %v1611
    %v1616 = vand.u32 2147483647, %v1606
    %vm1617 = vcmp.eq.f32.partialorder %v1616, 8.507059e+37
    %v1618 = vand.u32 %v1606, 2147483648
    %v1619 = vor.u32 1.1754944e-38, %v1618
    %v1620 = vsel %vm1617, %v1619, %v1615
    %v1621 = vmul.f32 1.0, %v1620
    %v1622 = vadd.f32 %v1580, %v287
    %v1623 = vmul.f32 %v1601, %v1622
    %v1624 = vadd.f32 %v1473, %v1623
    %v1625 = vtanh.pop %v1624
    %v1626 = vsub.f32 1.0, %v1621
    %v1627 = vmul.f32 %v1626, %v1625
    %v1628 = vmul.f32 %v1621, %v1467
    %v1629 = vadd.f32 %v1627, %v1628
    %vm1630 = vcmp.gt.s32.totalorder %v289, 7
    %v1631 = vsel %vm1630, 1, 0
    %1632 = vset.pattern.permute.xlu0 0
    %1633 = vperm.xlu0 %1632, %v1631
    %v1634 = vpop.permute.xlu0 %1633
    %vm1635 = vcmp.eq.s32.totalorder %v1634, 1
    %v1636 = vsel %vm1635, %v1629, %v1467
    %v1637 = vsel %vm1635, %v1629, 0.0
    %s1638 = scalar_lea.vmem [#allocation9], 56
    %1639 = vst [vmem:[%s1638] sm:$0xff] %v1637
    %1640 = vst [vmem:[#allocation10] sm:$0xff] %v1636
    // Predicated region
    $region38: #{tpu_custom_call.1} parent=1 // pred_check
      _
    $region39: #{tpu_custom_call.1} parent=1 // pred_check_branch
      %1642 = sbr.rel (0) target = $region41
    $region40: #{tpu_custom_call.1} parent=1 // pred_region
      %1644 = vsyncadd [#allocation5], 0
      %s1645 = sshll.u32 [#allocation9], 4
      %s1646 = int_to_ptr.vmem [resolvable:$true] %s1645
      %s1647 = sshll.u32 %s6, 4
      %s1648 = int_to_ptr.hbm [resolvable:$true] %s1647
      %1653 = dma.vmem_to_hbm [thread:$0]  %s1646, 1024, %s1648, [#allocation5], 128, 128, 8
    $region41: #{tpu_custom_call.1} parent=1 // pred_fallthru
      _
    // Predicated region
    $region42: #{tpu_custom_call.1} parent=1 // pred_check
      _
    $region43: #{tpu_custom_call.1} parent=1 // pred_check_branch
      %1655 = sbr.rel (0) target = $region45
    $region44: #{tpu_custom_call.1} parent=1 // pred_region
      %1657 = vsyncadd [#allocation11], 0
      %s1659 = sshll.u32 [#allocation10], 4
      %s1660 = int_to_ptr.vmem [resolvable:$true] %s1659
      %s1661 = sshll.u32 %s7, 4
      %s1662 = int_to_ptr.hbm [resolvable:$true] %s1661
      %1664 = dma.vmem_to_hbm [thread:$0]  %s1660, 128, %s1662, [#allocation11]
    $region45: #{tpu_custom_call.1} parent=1 // pred_fallthru
      _
    // Predicated region
    $region46: #{tpu_custom_call.1} parent=1 // pred_check
      _
    $region47: #{tpu_custom_call.1} parent=1 // pred_check_branch
      %1666 = sbr.rel (0) target = $region49
    $region48: #{tpu_custom_call.1} parent=1 // pred_region
      %1668 = dma.done [#allocation5], 1024
    $region49: #{tpu_custom_call.1} parent=1 // pred_fallthru
      _
    // Predicated region
    $region50: #{tpu_custom_call.1} parent=1 // pred_check
      _
    $region51: #{tpu_custom_call.1} parent=1 // pred_check_branch
      %1670 = sbr.rel (0) target = $region53
    $region52: #{tpu_custom_call.1} parent=1 // pred_region
      %1672 = dma.done [#allocation11], 128
    $region53: #{tpu_custom_call.1} parent=1 // pred_fallthru
      _
    %1673 = vsyncpa [#allocation4], 1
    %1674 = vsyncpa [#allocation7], 1
    %1675 = vsyncpa [#allocation5], 1
    %1676 = vsyncpa [#allocation11], 1

</llo_original>
